<compile_context>
chip_gen: v7x
topology: tpu7x:2x2x1
jax: 0.10.0
libtpu: 0.0.40
codegen_flags: <defaults>
</compile_context>

<pallas_src>
import jax
import jax.numpy as jnp
from jax import lax
from jax.experimental import pallas as pl
from jax.experimental.pallas import tpu as pltpu


# -----------------------------------------------------------------------------
# Tiling helper: largest multiple of `align` that divides `dim` and is <= target
# (falls back to the full dim, which always satisfies the BlockSpec rules).
# -----------------------------------------------------------------------------
def _pick_tile(dim, target, align):
    if dim <= target:
        return dim
    t = (target // align) * align
    while t >= align:
        if dim % t == 0:
            return t
        t -= align
    return dim


_BEST_PAD = 128  # lane-padded width of the running top-K scratch (first K lanes live)


# -----------------------------------------------------------------------------
# Kernel 1: fused pairwise squared distance + running top-K (kNN indices).
#   grid = (B, M//tm, N//tn), N innermost ("arbitrary"); scratch carries the
#   current best-K (value, index) per query row across N tiles; only the
#   (B, M, K) int32 indices are written to HBM.
# -----------------------------------------------------------------------------
def _make_knn_kernel(k_neighbors):
    def kernel(sup_ref, pos_ref, idx_out_ref, best_val, best_idx):
        # sup_ref: (D, tm)  pos_ref: (D, tn)  idx_out_ref: (tm, K)
        # best_val / best_idx: (tm, _BEST_PAD) VMEM scratch (first K lanes live)
        nj = pl.program_id(2)

        @pl.when(nj == 0)
        def _():
            best_val[...] = jnp.full(best_val.shape, jnp.inf, dtype=jnp.float32)
            best_idx[...] = jnp.zeros(best_idx.shape, dtype=jnp.int32)

        s = sup_ref[...].astype(jnp.float32)               # (D, tm)
        p = pos_ref[...].astype(jnp.float32)               # (D, tn)
        # Contract over D (axis 0 of both) -> (tm, tn); avoids in-kernel s.T.
        cross = lax.dot_general(s, p, (((0,), (0,)), ((), ())),
                                preferred_element_type=jnp.float32)
        s_norm = jnp.sum(s * s, axis=0)[:, None]           # (tm, 1)
        p_norm = jnp.sum(p * p, axis=0)[None, :]           # (1, tn)
        # Clamp: norm-expansion can go slightly negative for coincident points.
        dist = jnp.maximum(s_norm + p_norm - 2.0 * cross, 0.0)   # (tm, tn)

        tm, tn = dist.shape
        cand_idx = nj * tn + lax.broadcasted_iota(jnp.int32, (tm, tn), 1)

        # Merge carried best with the new tile (carried entries first so ties
        # resolve to the lower original index, matching lax.top_k).
        vals = jnp.concatenate([best_val[...], dist], axis=-1)      # (tm, PAD+tn)
        idxs = jnp.concatenate([best_idx[...], cand_idx], axis=-1)  # (tm, PAD+tn)
        ncols = vals.shape[-1]
        col = lax.broadcasted_iota(jnp.int32, (tm, ncols), 1)
        big_i32 = jnp.int32(2147483647)

        new_vals, new_idxs = [], []
        for _ in range(k_neighbors):                      # K=8: static unroll
            m = jnp.min(vals, axis=-1, keepdims=True)                      # (tm, 1)
            sel_pos = jnp.min(jnp.where(vals == m, col, ncols),
                              axis=-1, keepdims=True)                      # (tm, 1)
            chosen = col == sel_pos
            ci = jnp.min(jnp.where(chosen, idxs, big_i32),
                         axis=-1, keepdims=True)                           # (tm, 1)
            new_vals.append(m)
            new_idxs.append(ci)
            vals = jnp.where(chosen, jnp.inf, vals)

        new_vals = jnp.concatenate(new_vals, axis=-1)                      # (tm, K)
        new_idxs = jnp.concatenate(new_idxs, axis=-1)                      # (tm, K)
        best_val[:, :k_neighbors] = new_vals
        best_idx[:, :k_neighbors] = new_idxs

        @pl.when(nj == pl.num_programs(2) - 1)
        def _():
            idx_out_ref[...] = new_idxs

    return kernel


def knn_indices(support_points, pos, k, *, tm_target=256, tn_target=512):
    """indices[b, m, :] = k nearest points (in pos) to support_points[b, :, m]."""
    B, D, M = support_points.shape
    _, _, N = pos.shape
    tm = _pick_tile(M, tm_target, 128)
    tn = _pick_tile(N, tn_target, 128)
    assert tn >= k, "N tile must contain at least K candidate points"
    kernel = _make_knn_kernel(k)
    return pl.pallas_call(
        kernel,
        out_shape=jax.ShapeDtypeStruct((B, M, k), jnp.int32),
        grid=(B, M // tm, N // tn),
        in_specs=[
            pl.BlockSpec((None, D, tm), lambda b, mi, nj: (b, 0, mi)),
            pl.BlockSpec((None, D, tn), lambda b, mi, nj: (b, 0, nj)),
        ],
        out_specs=pl.BlockSpec((None, tm, k), lambda b, mi, nj: (b, mi, 0)),
        scratch_shapes=[
            pltpu.VMEM((tm, _BEST_PAD), jnp.float32),
            pltpu.VMEM((tm, _BEST_PAD), jnp.int32),
        ],
        compiler_params=pltpu.CompilerParams(
            dimension_semantics=("parallel", "parallel", "arbitrary")),
    )(support_points, pos)


# -----------------------------------------------------------------------------
# Kernel 2: neighbor gather + max reduction
#   out[b, c, m] = max_k  x[b, c, indices[b, m, k]]
# K-unrolled lane-dense one-hot MXU gather, tiled over M; x stays resident in
# VMEM across M tiles.  Indices are passed transposed (B, K, M) so the idx
# block is lane-dense (last dim = tm) instead of a lane-padded (M, 8) block.
# Assumes indices are in [0, N) (guaranteed by the kNN above).
# TODO(synk): for very large N, replace the one-hot matmul with a DMA row
# gather over an (N, C) layout (PrefetchScalarGridSpec + manual async copies).
# -----------------------------------------------------------------------------
def _make_gather_max_kernel(k_neighbors):
    def kernel(x_ref, idx_ref, out_ref):
        x = x_ref[...]                       # (C, N) native dtype (bf16 -> bf16 MXU)
        idx = idx_ref[...]                   # (K, tm) int32, lane-dense
        N = x.shape[1]
        tm = idx.shape[1]
        row = lax.broadcasted_iota(jnp.int32, (N, tm), 0)   # hoisted out of K loop
        acc = None
        for kk in range(k_neighbors):
            onehot = (row == idx[kk:kk + 1, :]).astype(x.dtype)           # (N, tm)
            g = jnp.dot(x, onehot, preferred_element_type=jnp.float32)    # (C, tm)
            acc = g if acc is None else jnp.maximum(acc, g)
        out_ref[...] = acc.astype(out_ref.dtype)

    return kernel


def gather_max(x, indices, *, tm_target=256):
    B, C, N = x.shape
    _, M, K = indices.shape
    tm = _pick_tile(M, tm_target, 128)
    idx_t = jnp.transpose(indices, (0, 2, 1)).astype(jnp.int32)   # (B, K, M)
    kernel = _make_gather_max_kernel(K)
    return pl.pallas_call(
        kernel,
        out_shape=jax.ShapeDtypeStruct((B, C, M), x.dtype),
        grid=(B, M // tm),
        in_specs=[
            pl.BlockSpec((None, C, N), lambda b, mi: (b, 0, 0)),   # resident over M tiles
            pl.BlockSpec((None, K, tm), lambda b, mi: (b, 0, mi)),
        ],
        out_specs=pl.BlockSpec((None, C, tm), lambda b, mi: (b, 0, mi)),
        compiler_params=pltpu.CompilerParams(
            dimension_semantics=("parallel", "parallel")),
    )(x, idx_t)


# -----------------------------------------------------------------------------
# The Module (dispatch semantics reproduced exactly from the PyTorch source)
# -----------------------------------------------------------------------------
class Module:
    # No parameters: the reference __init__ defines none.
    K = 8  # number of neighbors used by the representative implementation

    def forward_without_features(self, pos, support_points=None, indices=None):
        # TODO(synk): abstract (NotImplementedError) in the reference; this is a
        # minimal representative impl: identity sampling + fused Pallas kNN.
        if support_points is None:
            support_points = pos
        if indices is None:
            indices = knn_indices(support_points, pos, self.K)   # (B, M, K) int32
        return None, support_points, indices

    def forward_with_features(self, x, pos, support_points, indices):
        # TODO(synk): abstract (NotImplementedError) in the reference; this is a
        # minimal representative impl: neighbor gather + max reduce in Pallas.
        sp = support_points[0]
        idx = indices[0]
        feats = gather_max(x, idx)                               # (B, C, M)
        return feats, sp, idx

    def forward(self, x, pos, support_points=None, indices=None):
        if x is None:
            return self.forward_without_features(pos, support_points, indices)
        else:
            if support_points is None or indices is None:
                _, support_points, indices = self.forward_without_features(
                    pos, support_points, indices)
            if isinstance(support_points, jnp.ndarray):
                support_points = [support_points]
            if isinstance(indices, jnp.ndarray):
                indices = [indices]
            return self.forward_with_features(x, pos, support_points, indices)

    __call__ = forward


# -----------------------------------------------------------------------------
# Demo / correctness check
# -----------------------------------------------------------------------------
if __name__ == "__main__":
    key = jax.random.PRNGKey(0)
    k1, k2 = jax.random.split(key)

    B, C, N, K = 2, 4, 16, 8
    pos = jax.random.normal(k1, (B, 3, N), dtype=jnp.float32)
    x = jax.random.normal(k2, (B, C, N), dtype=jnp.float32)

    module = Module()

    # Branch 1: x is None  ->  forward_without_features (fused Pallas kNN).
    _, sp, idx = module.forward(None, pos)
    idx = jax.block_until_ready(idx)
    assert idx.shape == (B, N, K) and idx.dtype == jnp.int32

    # Value-based kNN check (robust to tie ordering / formula differences):
    # the K squared distances selected by the kernel must match the reference
    # K smallest squared distances.
    dist_ref = jnp.sum((pos[:, :, :, None] - pos[:, :, None, :]) ** 2, axis=1)
    d_sel = jnp.sort(jnp.take_along_axis(dist_ref, idx, axis=-1), axis=-1)
    d_top = jnp.sort(-lax.top_k(-dist_ref, K)[0], axis=-1)
    assert jnp.allclose(d_sel, d_top, atol=1e-4), "kNN kernel mismatch"

    # Branch 2: x given, support/indices supplied  ->  forward_with_features.
    feats, _, _ = module.forward(x, pos, support_points=sp, indices=idx)
    feats = jax.block_until_ready(feats)
    gathered_ref = jnp.take_along_axis(
        x[:, :, None, :], idx[:, None, :, :], axis=3)            # (B, C, M, K)
    feats_ref = jnp.max(gathered_ref, axis=-1)                   # (B, C, M)
    assert jnp.allclose(feats, feats_ref, atol=1e-4), "gather-max kernel mismatch"

    # Branch 3: x given, support/indices omitted (auto-computed path).
    feats_auto, _, _ = module.forward(x, pos)
    feats_auto = jax.block_until_ready(feats_auto)
    assert feats_auto.shape == (B, C, N)
    assert jnp.allclose(feats_auto, feats_ref, atol=1e-4)

    print("KERNEL_OK")
</pallas_src>

<mosaic_0001>
module attributes {stable_mosaic.version = 11 : i64} {
  func.func @kernel(%arg0: i32, %arg1: i32, %arg2: i32, %arg3: memref<1x3x16xf32, #tpu.memory_space<vmem>>, %arg4: memref<1x3x16xf32, #tpu.memory_space<vmem>>, %arg5: memref<1x16x8xi32, #tpu.memory_space<vmem>>, %arg6: memref<16x128xf32, #tpu.memory_space<vmem>>, %arg7: memref<16x128xi32, #tpu.memory_space<vmem>>) attributes {dimension_semantics = [#tpu.dimension_semantics<parallel>, #tpu.dimension_semantics<parallel>, #tpu.dimension_semantics<arbitrary>], iteration_bounds = array<i64: 2, 1, 1>, scalar_prefetch = 0 : i64, scratch_operands = 2 : i64, tpu.core_type = #tpu.core_type<tc>, window_params = [{transform_indices = @transform_0, window_bounds = array<i64: 1, 3, 16>}, {transform_indices = @transform_1, window_bounds = array<i64: 1, 3, 16>}, {transform_indices = @transform_2, window_bounds = array<i64: 1, 16, 8>}]} {
    %c0_i32 = arith.constant 0 : i32
    %0 = arith.cmpi eq, %arg2, %c0_i32 : i32
    %1 = arith.extui %0 : i1 to i32
    %c0_i32_0 = arith.constant 0 : i32
    %2 = arith.cmpi ne, %1, %c0_i32_0 : i32
    scf.if %2 {
      %cst_65 = arith.constant 0x7F800000 : f32
      %164 = vector.broadcast %cst_65 : f32 to vector<16x128xf32>
      %c0_66 = arith.constant 0 : index
      %c0_67 = arith.constant 0 : index
      %165 = vector.load %arg6[%c0_66, %c0_67] : memref<16x128xf32, #tpu.memory_space<vmem>>, vector<16x128xf32>
      tpu.vector_store %arg6[%c0_66, %c0_67], %164 {strides = array<i32>} : memref<16x128xf32, #tpu.memory_space<vmem>>, vector<16x128xf32>,
      %c0_i32_68 = arith.constant 0 : i32
      %166 = vector.broadcast %c0_i32_68 : i32 to vector<16x128xi32>
      %c0_69 = arith.constant 0 : index
      %c0_70 = arith.constant 0 : index
      %167 = vector.load %arg7[%c0_69, %c0_70] : memref<16x128xi32, #tpu.memory_space<vmem>>, vector<16x128xi32>
      tpu.vector_store %arg7[%c0_69, %c0_70], %166 {strides = array<i32>} : memref<16x128xi32, #tpu.memory_space<vmem>>, vector<16x128xi32>,
    } else {
    }
    %c0 = arith.constant 0 : index
    %c0_1 = arith.constant 0 : index
    %c0_2 = arith.constant 0 : index
    %3 = vector.load %arg3[%c0, %c0_1, %c0_2] : memref<1x3x16xf32, #tpu.memory_space<vmem>>, vector<1x3x16xf32>
    %4 = vector.shape_cast %3 : vector<1x3x16xf32> to vector<3x16xf32>
    %c0_3 = arith.constant 0 : index
    %c0_4 = arith.constant 0 : index
    %c0_5 = arith.constant 0 : index
    %5 = vector.load %arg4[%c0_3, %c0_4, %c0_5] : memref<1x3x16xf32, #tpu.memory_space<vmem>>, vector<1x3x16xf32>
    %6 = vector.shape_cast %5 : vector<1x3x16xf32> to vector<3x16xf32>
    %cst = arith.constant dense<0.000000e+00> : vector<16x16xf32>
    %7 = tpu.matmul %4, %6, %cst {dimension_numbers = #tpu.dot_dimension_numbers<[0], [0], [1], [1], [0, 1, 1, 1], [], []>} : vector<3x16xf32>, vector<3x16xf32>, vector<16x16xf32> -> vector<16x16xf32>
    %8 = arith.mulf %4, %4 : vector<3x16xf32>
    %cst_6 = arith.constant dense<0.000000e+00> : vector<16xf32>
    %9 = vector.multi_reduction <add>, %8, %cst_6 [0] : vector<3x16xf32> to vector<16xf32>
    %10 = vector.shape_cast %9 : vector<16xf32> to vector<16x1xf32>
    %11 = arith.mulf %6, %6 : vector<3x16xf32>
    %cst_7 = arith.constant dense<0.000000e+00> : vector<16xf32>
    %12 = vector.multi_reduction <add>, %11, %cst_7 [0] : vector<3x16xf32> to vector<16xf32>
    %13 = vector.shape_cast %12 : vector<16xf32> to vector<1x16xf32>
    %14 = vector.broadcast %10 : vector<16x1xf32> to vector<16x16xf32>
    %15 = vector.broadcast %13 : vector<1x16xf32> to vector<16x16xf32>
    %16 = arith.addf %14, %15 : vector<16x16xf32>
    %cst_8 = arith.constant 2.000000e+00 : f32
    %17 = vector.broadcast %cst_8 : f32 to vector<16x16xf32>
    %18 = arith.mulf %17, %7 : vector<16x16xf32>
    %19 = arith.subf %16, %18 : vector<16x16xf32>
    %cst_9 = arith.constant 0.000000e+00 : f32
    %20 = vector.broadcast %cst_9 : f32 to vector<16x16xf32>
    %21 = arith.maximumf %19, %20 : vector<16x16xf32>
    %c16_i32 = arith.constant 16 : i32
    %22 = arith.muli %arg2, %c16_i32 : i32
    %23 = tpu.iota {dimensions = array<i32: 1>} : vector<16x16xi32>
    %24 = vector.broadcast %22 : i32 to vector<16x16xi32>
    %25 = arith.addi %24, %23 : vector<16x16xi32>
    %c0_10 = arith.constant 0 : index
    %c0_11 = arith.constant 0 : index
    %26 = vector.load %arg6[%c0_10, %c0_11] : memref<16x128xf32, #tpu.memory_space<vmem>>, vector<16x128xf32>
    %27 = tpu.concatenate %26, %21 in 1 : vector<16x128xf32>, vector<16x16xf32> -> vector<16x144xf32>
    %c0_12 = arith.constant 0 : index
    %c0_13 = arith.constant 0 : index
    %28 = vector.load %arg7[%c0_12, %c0_13] : memref<16x128xi32, #tpu.memory_space<vmem>>, vector<16x128xi32>
    %29 = tpu.concatenate %28, %25 in 1 : vector<16x128xi32>, vector<16x16xi32> -> vector<16x144xi32>
    %30 = tpu.iota {dimensions = array<i32: 1>} : vector<16x144xi32>
    %cst_14 = arith.constant dense<0x7F800000> : vector<16xf32>
    %31 = vector.multi_reduction <minimumf>, %27, %cst_14 [1] : vector<16x144xf32> to vector<16xf32>
    %32 = vector.shape_cast %31 : vector<16xf32> to vector<16x1xf32>
    %33 = vector.broadcast %32 : vector<16x1xf32> to vector<16x144xf32>
    %34 = arith.cmpf oeq, %27, %33 : vector<16x144xf32>
    %c144_i32 = arith.constant 144 : i32
    %35 = vector.broadcast %c144_i32 : i32 to vector<16x144xi32>
    %36 = arith.select %34, %30, %35 : vector<16x144xi1>, vector<16x144xi32>
    %cst_15 = arith.constant dense<2147483647> : vector<16xi32>
    %37 = vector.multi_reduction <minsi>, %36, %cst_15 [1] : vector<16x144xi32> to vector<16xi32>
    %38 = vector.shape_cast %37 : vector<16xi32> to vector<16x1xi32>
    %39 = vector.broadcast %38 : vector<16x1xi32> to vector<16x144xi32>
    %40 = arith.cmpi eq, %30, %39 : vector<16x144xi32>
    %c2147483647_i32 = arith.constant 2147483647 : i32
    %41 = vector.broadcast %c2147483647_i32 : i32 to vector<16x144xi32>
    %42 = arith.select %40, %29, %41 : vector<16x144xi1>, vector<16x144xi32>
    %cst_16 = arith.constant dense<2147483647> : vector<16xi32>
    %43 = vector.multi_reduction <minsi>, %42, %cst_16 [1] : vector<16x144xi32> to vector<16xi32>
    %44 = vector.shape_cast %43 : vector<16xi32> to vector<16x1xi32>
    %cst_17 = arith.constant 0x7F800000 : f32
    %45 = vector.broadcast %cst_17 : f32 to vector<16x144xf32>
    %46 = arith.select %40, %45, %27 : vector<16x144xi1>, vector<16x144xf32>
    %cst_18 = arith.constant dense<0x7F800000> : vector<16xf32>
    %47 = vector.multi_reduction <minimumf>, %46, %cst_18 [1] : vector<16x144xf32> to vector<16xf32>
    %48 = vector.shape_cast %47 : vector<16xf32> to vector<16x1xf32>
    %49 = vector.broadcast %48 : vector<16x1xf32> to vector<16x144xf32>
    %50 = arith.cmpf oeq, %46, %49 : vector<16x144xf32>
    %c144_i32_19 = arith.constant 144 : i32
    %51 = vector.broadcast %c144_i32_19 : i32 to vector<16x144xi32>
    %52 = arith.select %50, %30, %51 : vector<16x144xi1>, vector<16x144xi32>
    %cst_20 = arith.constant dense<2147483647> : vector<16xi32>
    %53 = vector.multi_reduction <minsi>, %52, %cst_20 [1] : vector<16x144xi32> to vector<16xi32>
    %54 = vector.shape_cast %53 : vector<16xi32> to vector<16x1xi32>
    %55 = vector.broadcast %54 : vector<16x1xi32> to vector<16x144xi32>
    %56 = arith.cmpi eq, %30, %55 : vector<16x144xi32>
    %c2147483647_i32_21 = arith.constant 2147483647 : i32
    %57 = vector.broadcast %c2147483647_i32_21 : i32 to vector<16x144xi32>
    %58 = arith.select %56, %29, %57 : vector<16x144xi1>, vector<16x144xi32>
    %cst_22 = arith.constant dense<2147483647> : vector<16xi32>
    %59 = vector.multi_reduction <minsi>, %58, %cst_22 [1] : vector<16x144xi32> to vector<16xi32>
    %60 = vector.shape_cast %59 : vector<16xi32> to vector<16x1xi32>
    %cst_23 = arith.constant 0x7F800000 : f32
    %61 = vector.broadcast %cst_23 : f32 to vector<16x144xf32>
    %62 = arith.select %56, %61, %46 : vector<16x144xi1>, vector<16x144xf32>
    %cst_24 = arith.constant dense<0x7F800000> : vector<16xf32>
    %63 = vector.multi_reduction <minimumf>, %62, %cst_24 [1] : vector<16x144xf32> to vector<16xf32>
    %64 = vector.shape_cast %63 : vector<16xf32> to vector<16x1xf32>
    %65 = vector.broadcast %64 : vector<16x1xf32> to vector<16x144xf32>
    %66 = arith.cmpf oeq, %62, %65 : vector<16x144xf32>
    %c144_i32_25 = arith.constant 144 : i32
    %67 = vector.broadcast %c144_i32_25 : i32 to vector<16x144xi32>
    %68 = arith.select %66, %30, %67 : vector<16x144xi1>, vector<16x144xi32>
    %cst_26 = arith.constant dense<2147483647> : vector<16xi32>
    %69 = vector.multi_reduction <minsi>, %68, %cst_26 [1] : vector<16x144xi32> to vector<16xi32>
    %70 = vector.shape_cast %69 : vector<16xi32> to vector<16x1xi32>
    %71 = vector.broadcast %70 : vector<16x1xi32> to vector<16x144xi32>
    %72 = arith.cmpi eq, %30, %71 : vector<16x144xi32>
    %c2147483647_i32_27 = arith.constant 2147483647 : i32
    %73 = vector.broadcast %c2147483647_i32_27 : i32 to vector<16x144xi32>
    %74 = arith.select %72, %29, %73 : vector<16x144xi1>, vector<16x144xi32>
    %cst_28 = arith.constant dense<2147483647> : vector<16xi32>
    %75 = vector.multi_reduction <minsi>, %74, %cst_28 [1] : vector<16x144xi32> to vector<16xi32>
    %76 = vector.shape_cast %75 : vector<16xi32> to vector<16x1xi32>
    %cst_29 = arith.constant 0x7F800000 : f32
    %77 = vector.broadcast %cst_29 : f32 to vector<16x144xf32>
    %78 = arith.select %72, %77, %62 : vector<16x144xi1>, vector<16x144xf32>
    %cst_30 = arith.constant dense<0x7F800000> : vector<16xf32>
    %79 = vector.multi_reduction <minimumf>, %78, %cst_30 [1] : vector<16x144xf32> to vector<16xf32>
    %80 = vector.shape_cast %79 : vector<16xf32> to vector<16x1xf32>
    %81 = vector.broadcast %80 : vector<16x1xf32> to vector<16x144xf32>
    %82 = arith.cmpf oeq, %78, %81 : vector<16x144xf32>
    %c144_i32_31 = arith.constant 144 : i32
    %83 = vector.broadcast %c144_i32_31 : i32 to vector<16x144xi32>
    %84 = arith.select %82, %30, %83 : vector<16x144xi1>, vector<16x144xi32>
    %cst_32 = arith.constant dense<2147483647> : vector<16xi32>
    %85 = vector.multi_reduction <minsi>, %84, %cst_32 [1] : vector<16x144xi32> to vector<16xi32>
    %86 = vector.shape_cast %85 : vector<16xi32> to vector<16x1xi32>
    %87 = vector.broadcast %86 : vector<16x1xi32> to vector<16x144xi32>
    %88 = arith.cmpi eq, %30, %87 : vector<16x144xi32>
    %c2147483647_i32_33 = arith.constant 2147483647 : i32
    %89 = vector.broadcast %c2147483647_i32_33 : i32 to vector<16x144xi32>
    %90 = arith.select %88, %29, %89 : vector<16x144xi1>, vector<16x144xi32>
    %cst_34 = arith.constant dense<2147483647> : vector<16xi32>
    %91 = vector.multi_reduction <minsi>, %90, %cst_34 [1] : vector<16x144xi32> to vector<16xi32>
    %92 = vector.shape_cast %91 : vector<16xi32> to vector<16x1xi32>
    %cst_35 = arith.constant 0x7F800000 : f32
    %93 = vector.broadcast %cst_35 : f32 to vector<16x144xf32>
    %94 = arith.select %88, %93, %78 : vector<16x144xi1>, vector<16x144xf32>
    %cst_36 = arith.constant dense<0x7F800000> : vector<16xf32>
    %95 = vector.multi_reduction <minimumf>, %94, %cst_36 [1] : vector<16x144xf32> to vector<16xf32>
    %96 = vector.shape_cast %95 : vector<16xf32> to vector<16x1xf32>
    %97 = vector.broadcast %96 : vector<16x1xf32> to vector<16x144xf32>
    %98 = arith.cmpf oeq, %94, %97 : vector<16x144xf32>
    %c144_i32_37 = arith.constant 144 : i32
    %99 = vector.broadcast %c144_i32_37 : i32 to vector<16x144xi32>
    %100 = arith.select %98, %30, %99 : vector<16x144xi1>, vector<16x144xi32>
    %cst_38 = arith.constant dense<2147483647> : vector<16xi32>
    %101 = vector.multi_reduction <minsi>, %100, %cst_38 [1] : vector<16x144xi32> to vector<16xi32>
    %102 = vector.shape_cast %101 : vector<16xi32> to vector<16x1xi32>
    %103 = vector.broadcast %102 : vector<16x1xi32> to vector<16x144xi32>
    %104 = arith.cmpi eq, %30, %103 : vector<16x144xi32>
    %c2147483647_i32_39 = arith.constant 2147483647 : i32
    %105 = vector.broadcast %c2147483647_i32_39 : i32 to vector<16x144xi32>
    %106 = arith.select %104, %29, %105 : vector<16x144xi1>, vector<16x144xi32>
    %cst_40 = arith.constant dense<2147483647> : vector<16xi32>
    %107 = vector.multi_reduction <minsi>, %106, %cst_40 [1] : vector<16x144xi32> to vector<16xi32>
    %108 = vector.shape_cast %107 : vector<16xi32> to vector<16x1xi32>
    %cst_41 = arith.constant 0x7F800000 : f32
    %109 = vector.broadcast %cst_41 : f32 to vector<16x144xf32>
    %110 = arith.select %104, %109, %94 : vector<16x144xi1>, vector<16x144xf32>
    %cst_42 = arith.constant dense<0x7F800000> : vector<16xf32>
    %111 = vector.multi_reduction <minimumf>, %110, %cst_42 [1] : vector<16x144xf32> to vector<16xf32>
    %112 = vector.shape_cast %111 : vector<16xf32> to vector<16x1xf32>
    %113 = vector.broadcast %112 : vector<16x1xf32> to vector<16x144xf32>
    %114 = arith.cmpf oeq, %110, %113 : vector<16x144xf32>
    %c144_i32_43 = arith.constant 144 : i32
    %115 = vector.broadcast %c144_i32_43 : i32 to vector<16x144xi32>
    %116 = arith.select %114, %30, %115 : vector<16x144xi1>, vector<16x144xi32>
    %cst_44 = arith.constant dense<2147483647> : vector<16xi32>
    %117 = vector.multi_reduction <minsi>, %116, %cst_44 [1] : vector<16x144xi32> to vector<16xi32>
    %118 = vector.shape_cast %117 : vector<16xi32> to vector<16x1xi32>
    %119 = vector.broadcast %118 : vector<16x1xi32> to vector<16x144xi32>
    %120 = arith.cmpi eq, %30, %119 : vector<16x144xi32>
    %c2147483647_i32_45 = arith.constant 2147483647 : i32
    %121 = vector.broadcast %c2147483647_i32_45 : i32 to vector<16x144xi32>
    %122 = arith.select %120, %29, %121 : vector<16x144xi1>, vector<16x144xi32>
    %cst_46 = arith.constant dense<2147483647> : vector<16xi32>
    %123 = vector.multi_reduction <minsi>, %122, %cst_46 [1] : vector<16x144xi32> to vector<16xi32>
    %124 = vector.shape_cast %123 : vector<16xi32> to vector<16x1xi32>
    %cst_47 = arith.constant 0x7F800000 : f32
    %125 = vector.broadcast %cst_47 : f32 to vector<16x144xf32>
    %126 = arith.select %120, %125, %110 : vector<16x144xi1>, vector<16x144xf32>
    %cst_48 = arith.constant dense<0x7F800000> : vector<16xf32>
    %127 = vector.multi_reduction <minimumf>, %126, %cst_48 [1] : vector<16x144xf32> to vector<16xf32>
    %128 = vector.shape_cast %127 : vector<16xf32> to vector<16x1xf32>
    %129 = vector.broadcast %128 : vector<16x1xf32> to vector<16x144xf32>
    %130 = arith.cmpf oeq, %126, %129 : vector<16x144xf32>
    %c144_i32_49 = arith.constant 144 : i32
    %131 = vector.broadcast %c144_i32_49 : i32 to vector<16x144xi32>
    %132 = arith.select %130, %30, %131 : vector<16x144xi1>, vector<16x144xi32>
    %cst_50 = arith.constant dense<2147483647> : vector<16xi32>
    %133 = vector.multi_reduction <minsi>, %132, %cst_50 [1] : vector<16x144xi32> to vector<16xi32>
    %134 = vector.shape_cast %133 : vector<16xi32> to vector<16x1xi32>
    %135 = vector.broadcast %134 : vector<16x1xi32> to vector<16x144xi32>
    %136 = arith.cmpi eq, %30, %135 : vector<16x144xi32>
    %c2147483647_i32_51 = arith.constant 2147483647 : i32
    %137 = vector.broadcast %c2147483647_i32_51 : i32 to vector<16x144xi32>
    %138 = arith.select %136, %29, %137 : vector<16x144xi1>, vector<16x144xi32>
    %cst_52 = arith.constant dense<2147483647> : vector<16xi32>
    %139 = vector.multi_reduction <minsi>, %138, %cst_52 [1] : vector<16x144xi32> to vector<16xi32>
    %140 = vector.shape_cast %139 : vector<16xi32> to vector<16x1xi32>
    %cst_53 = arith.constant 0x7F800000 : f32
    %141 = vector.broadcast %cst_53 : f32 to vector<16x144xf32>
    %142 = arith.select %136, %141, %126 : vector<16x144xi1>, vector<16x144xf32>
    %cst_54 = arith.constant dense<0x7F800000> : vector<16xf32>
    %143 = vector.multi_reduction <minimumf>, %142, %cst_54 [1] : vector<16x144xf32> to vector<16xf32>
    %144 = vector.shape_cast %143 : vector<16xf32> to vector<16x1xf32>
    %145 = vector.broadcast %144 : vector<16x1xf32> to vector<16x144xf32>
    %146 = arith.cmpf oeq, %142, %145 : vector<16x144xf32>
    %c144_i32_55 = arith.constant 144 : i32
    %147 = vector.broadcast %c144_i32_55 : i32 to vector<16x144xi32>
    %148 = arith.select %146, %30, %147 : vector<16x144xi1>, vector<16x144xi32>
    %cst_56 = arith.constant dense<2147483647> : vector<16xi32>
    %149 = vector.multi_reduction <minsi>, %148, %cst_56 [1] : vector<16x144xi32> to vector<16xi32>
    %150 = vector.shape_cast %149 : vector<16xi32> to vector<16x1xi32>
    %151 = vector.broadcast %150 : vector<16x1xi32> to vector<16x144xi32>
    %152 = arith.cmpi eq, %30, %151 : vector<16x144xi32>
    %c2147483647_i32_57 = arith.constant 2147483647 : i32
    %153 = vector.broadcast %c2147483647_i32_57 : i32 to vector<16x144xi32>
    %154 = arith.select %152, %29, %153 : vector<16x144xi1>, vector<16x144xi32>
    %cst_58 = arith.constant dense<2147483647> : vector<16xi32>
    %155 = vector.multi_reduction <minsi>, %154, %cst_58 [1] : vector<16x144xi32> to vector<16xi32>
    %156 = vector.shape_cast %155 : vector<16xi32> to vector<16x1xi32>
    %157 = tpu.concatenate %32, %48, %64, %80, %96, %112, %128, %144 in 1 : vector<16x1xf32>, vector<16x1xf32>, vector<16x1xf32>, vector<16x1xf32>, vector<16x1xf32>, vector<16x1xf32>, vector<16x1xf32>, vector<16x1xf32> -> vector<16x8xf32>
    %158 = tpu.concatenate %44, %60, %76, %92, %108, %124, %140, %156 in 1 : vector<16x1xi32>, vector<16x1xi32>, vector<16x1xi32>, vector<16x1xi32>, vector<16x1xi32>, vector<16x1xi32>, vector<16x1xi32>, vector<16x1xi32> -> vector<16x8xi32>
    %c0_59 = arith.constant 0 : index
    %c0_60 = arith.constant 0 : index
    %159 = vector.load %arg6[%c0_59, %c0_60] : memref<16x128xf32, #tpu.memory_space<vmem>>, vector<16x8xf32>
    tpu.vector_store %arg6[%c0_59, %c0_60], %157 {strides = array<i32>} : memref<16x128xf32, #tpu.memory_space<vmem>>, vector<16x8xf32>,
    %c0_61 = arith.constant 0 : index
    %c0_62 = arith.constant 0 : index
    %160 = vector.load %arg7[%c0_61, %c0_62] : memref<16x128xi32, #tpu.memory_space<vmem>>, vector<16x8xi32>
    tpu.vector_store %arg7[%c0_61, %c0_62], %158 {strides = array<i32>} : memref<16x128xi32, #tpu.memory_space<vmem>>, vector<16x8xi32>,
    %c0_i32_63 = arith.constant 0 : i32
    %161 = arith.cmpi eq, %arg2, %c0_i32_63 : i32
    %162 = arith.extui %161 : i1 to i32
    %c0_i32_64 = arith.constant 0 : i32
    %163 = arith.cmpi ne, %162, %c0_i32_64 : i32
    scf.if %163 {
      %c0_65 = arith.constant 0 : index
      %c0_66 = arith.constant 0 : index
      %c0_67 = arith.constant 0 : index
      %164 = vector.load %arg5[%c0_65, %c0_66, %c0_67] : memref<1x16x8xi32, #tpu.memory_space<vmem>>, vector<1x16x8xi32>
      %165 = vector.shape_cast %164 : vector<1x16x8xi32> to vector<16x8xi32>
      %166 = vector.shape_cast %158 : vector<16x8xi32> to vector<1x16x8xi32>
      tpu.vector_store %arg5[%c0_65, %c0_66, %c0_67], %166 {strides = array<i32>} : memref<1x16x8xi32, #tpu.memory_space<vmem>>, vector<1x16x8xi32>,
    } else {
    }
    return
  }
  func.func @transform_0(%arg0: i32, %arg1: i32, %arg2: i32) -> (i32, i32, i32) {
    %c0_i32 = arith.constant 0 : i32
    %c0_i32_0 = arith.constant 0 : i32
    return %arg0, %c0_i32, %arg1 : i32, i32, i32
  }
  func.func @transform_1(%arg0: i32, %arg1: i32, %arg2: i32) -> (i32, i32, i32) {
    %c0_i32 = arith.constant 0 : i32
    %c0_i32_0 = arith.constant 0 : i32
    return %arg0, %c0_i32, %arg2 : i32, i32, i32
  }
  func.func @transform_2(%arg0: i32, %arg1: i32, %arg2: i32) -> (i32, i32, i32) {
    %c0_i32 = arith.constant 0 : i32
    %c0_i32_0 = arith.constant 0 : i32
    return %arg0, %arg1, %c0_i32 : i32, i32, i32
  }
}

</mosaic_0001>

<llo_original>
// kernel: tpu_custom_call.1
$region0: #{tpu_custom_call.1}
  #allocation0 [shape = 'u32[]', space=smem, size = 0x4, offset = 0x4, fixed_abs, tag = 'smem constant byte address 0x4 - core index']
  #allocation1 [shape = 'u32[144,128]{1,0:T(1,128)}', space=vmem, size = 0x12000, scoped, tag = 'internal scratch']
  #allocation2 [shape = 'f32[16,128]{1,0:T(8,128)}', space=vmem, size = 0x2000, scoped, tag = 'scratch operand']
  #allocation3 [shape = 's32[16,128]{1,0:T(8,128)}', space=vmem, size = 0x2000, scoped, tag = 'scratch operand']
  %s0 = inlined_call_operand.vmem [shape: f32[2,3,16], index: 0, kind: input, shape index: {}]
  %s1 = inlined_call_operand.vmem [shape: f32[2,3,16], index: 1, kind: input, shape index: {}]
  %s2 = inlined_call_operand.vmem [shape: s32[2,16,8], index: 2, kind: output, shape index: {}]
  %s3 = sld [smem:[#allocation0]]
  $region49: #{tpu_custom_call.1} parent=0
    _
  %s5 = ssub.s32 1, %s3
  %s6 = scalar_select 0, %s5, %s3
  loop: start=0, step=1, limit=4
  $region2: #{tpu_custom_call.1} parent=0 // loop_pre_header
    _
  $region3: #{tpu_custom_call.1} parent=0 // loop_header
    %s8 = sphi 0, %s12
    %p9 = scmp.ge.s32.totalorder %s8, 4
    %s15 = sphi 0, %s34
    %s16 = sphi 0, %s30
    %s17 = sphi 0, %s26
    %s18 = sphi 0, %s15
    %s19 = sphi 0, %s16
    %s20 = sphi 0, %s17
    %s21 = sphi 0, %s18
    %s22 = sphi 0, %s19
    %s23 = sphi 0, %s20
    %s39 = sphi 0, %s41
    %s42 = sphi 0, %s39
    %s43 = sphi 0, %s42
    %s59 = sphi 0, %s43
    %s67 = sphi 0, %s69
    %s70 = sphi 0, %s67
    %s71 = sphi 0, %s70
    %s87 = sphi 0, %s71
    %s95 = sphi 0, %s97
    %s98 = sphi 0, %s95
    %s99 = sphi 0, %s98
    %s115 = sphi 0, %s99
  $region4: #{tpu_custom_call.1} parent=0 // loop_header_branch
    %11 = sbr.rel (%p9) target = $region8
  $region5: #{tpu_custom_call.1} parent=0 // loop_body
    %s13 = ssub.s32 %s8, 1
    %s14 = ssub.s32 %s8, 2
    %s24 = sadd.s32 1, %s17
    %p25 = scmp.ge.s32.totalorder %s24, 1
    %s26 = scalar_select %p25, 0, %s24
    %s27 = sadd.s32 1, %s16
    %s28 = scalar_select %p25, %s27, %s16
    %p29 = scmp.ge.s32.totalorder %s28, 1
    %s30 = scalar_select %p29, 0, %s28
    %s31 = sadd.s32 1, %s15
    %s32 = scalar_select %p29, %s31, %s15
    %p33 = scmp.ge.s32.totalorder %s32, 2
    %s34 = scalar_select %p33, 0, %s32
    %s35 = ssub.s32 %s15, %s34
    %s36 = ssub.s32 %s16, %s30
    %s37 = sor.u32 %s35, %s36
    %p38 = scmp.eq.s32.totalorder %s37, 0
    %s40 = sadd.s32 %s39, 1
    %s41 = scalar_select %p38, %s39, %s40
    %p44 = pneg %p38
    %p45 = scmp.eq.s32.totalorder %s8, 1
    %p46 = por %p44, %p45
    %p47 = scmp.ne.s32.totalorder %s39, %s42
    %p48 = scmp.eq.s32.totalorder %s8, 0
    %p49 = por %p47, %p48
    %p50 = scmp.ne.s32.totalorder %s39, %s42
    %p51 = scmp.eq.s32.totalorder %s13, 1
    %p52 = por %p50, %p51
    %p53 = scmp.ne.s32.totalorder %s42, %s43
    %p54 = scmp.eq.s32.totalorder %s13, 0
    %p55 = por %p53, %p54
    %p56 = scmp.ne.s32.totalorder %s42, %s43
    %p57 = scmp.eq.s32.totalorder %s14, 1
    %p58 = por %p56, %p57
    %p60 = scmp.ne.s32.totalorder %s43, %s59
    %p61 = scmp.eq.s32.totalorder %s14, 0
    %p62 = por %p60, %p61
    %s63 = ssub.s32 %s15, %s34
    %s64 = ssub.s32 %s17, %s26
    %s65 = sor.u32 %s63, %s64
    %p66 = scmp.eq.s32.totalorder %s65, 0
    %s68 = sadd.s32 %s67, 1
    %s69 = scalar_select %p66, %s67, %s68
    %p72 = pneg %p66
    %p73 = scmp.eq.s32.totalorder %s8, 1
    %p74 = por %p72, %p73
    %p75 = scmp.ne.s32.totalorder %s67, %s70
    %p76 = scmp.eq.s32.totalorder %s8, 0
    %p77 = por %p75, %p76
    %p78 = scmp.ne.s32.totalorder %s67, %s70
    %p79 = scmp.eq.s32.totalorder %s13, 1
    %p80 = por %p78, %p79
    %p81 = scmp.ne.s32.totalorder %s70, %s71
    %p82 = scmp.eq.s32.totalorder %s13, 0
    %p83 = por %p81, %p82
    %p84 = scmp.ne.s32.totalorder %s70, %s71
    %p85 = scmp.eq.s32.totalorder %s14, 1
    %p86 = por %p84, %p85
    %p88 = scmp.ne.s32.totalorder %s71, %s87
    %p89 = scmp.eq.s32.totalorder %s14, 0
    %p90 = por %p88, %p89
    %s91 = ssub.s32 %s15, %s34
    %s92 = ssub.s32 %s16, %s30
    %s93 = sor.u32 %s91, %s92
    %p94 = scmp.eq.s32.totalorder %s93, 0
    %s96 = sadd.s32 %s95, 1
    %s97 = scalar_select %p94, %s95, %s96
    %p100 = pneg %p94
    %p101 = scmp.eq.s32.totalorder %s8, 1
    %p102 = por %p100, %p101
    %p103 = scmp.ne.s32.totalorder %s95, %s98
    %p104 = scmp.eq.s32.totalorder %s8, 0
    %p105 = por %p103, %p104
    %p106 = scmp.ne.s32.totalorder %s95, %s98
    %p107 = scmp.eq.s32.totalorder %s13, 1
    %p108 = por %p106, %p107
    %p109 = scmp.ne.s32.totalorder %s98, %s99
    %p110 = scmp.eq.s32.totalorder %s13, 0
    %p111 = por %p109, %p110
    %p112 = scmp.ne.s32.totalorder %s98, %s99
    %p113 = scmp.eq.s32.totalorder %s14, 1
    %p114 = por %p112, %p113
    %p116 = scmp.ne.s32.totalorder %s99, %s115
    %p117 = scmp.eq.s32.totalorder %s14, 0
    %p118 = por %p116, %p117
    %p119 = scmp.le.s32.totalorder 1, %s8
    %p120 = scmp.lt.s32.totalorder %s8, 3
    %p121 = pnand %p119, %p120
    %p122 = pneg %p121
    // Predicated region
    $region9: #{tpu_custom_call.1} parent=5 // pred_check
      _
    $region10: #{tpu_custom_call.1} parent=5 // pred_check_branch
      %124 = sbr.rel (%p121) target = $region12
    $region11: #{tpu_custom_call.1} parent=5 // pred_region
      %s125 = ssub.s32 %s8, 1
    $region12: #{tpu_custom_call.1} parent=5 // pred_fallthru
      _
    %p126 = scmp.lt.s32.totalorder %s8, 2
    // Predicated region
    $region13: #{tpu_custom_call.1} parent=5 // pred_check
      %p127 = pneg %p126
    $region14: #{tpu_custom_call.1} parent=5 // pred_check_branch
      %129 = sbr.rel (%p127) target = $region16
    $region15: #{tpu_custom_call.1} parent=5 // pred_region
      // Predicated region
      $region17: #{tpu_custom_call.1} parent=15 // pred_check
        %p130 = pneg %p49
      $region18: #{tpu_custom_call.1} parent=15 // pred_check_branch
        %132 = sbr.rel (%p130) target = $region20
      $region19: #{tpu_custom_call.1} parent=15 // pred_region
        %p133 = scmp.lt.s32.totalorder %s15, 1
        %s134 = scalar_select %p133, %s15, 1
        %p135 = scmp.lt.s32.totalorder %s16, 0
        %s136 = scalar_select %p135, %s16, 0
        %s137 = sadd.s32 %s136, %s134
        %s138 = smul.addr %s137, 4
        %s139 = scalar_lea.vmem %s0, %s138
      $region20: #{tpu_custom_call.1} parent=15 // pred_fallthru
        _
      // Predicated region
      $region21: #{tpu_custom_call.1} parent=15 // pred_check
        %p140 = pneg %p77
      $region22: #{tpu_custom_call.1} parent=15 // pred_check_branch
        %142 = sbr.rel (%p140) target = $region24
      $region23: #{tpu_custom_call.1} parent=15 // pred_region
        %p143 = scmp.lt.s32.totalorder %s15, 1
        %s144 = scalar_select %p143, %s15, 1
        %p145 = scmp.lt.s32.totalorder %s17, 0
        %s146 = scalar_select %p145, %s17, 0
        %s147 = sadd.s32 %s146, %s144
        %s148 = smul.addr %s147, 4
        %s149 = scalar_lea.vmem %s1, %s148
      $region24: #{tpu_custom_call.1} parent=15 // pred_fallthru
        _
    $region16: #{tpu_custom_call.1} parent=5 // pred_fallthru
      _
    %p150 = scmp.le.s32.totalorder 1, %s8
    %p151 = scmp.lt.s32.totalorder %s8, 3
    %p152 = pnand %p150, %p151
    %p153 = pneg %p152
    // Predicated region
    $region25: #{tpu_custom_call.1} parent=5 // pred_check
      _
    $region26: #{tpu_custom_call.1} parent=5 // pred_check_branch
      %155 = sbr.rel (%p152) target = $region28
    $region27: #{tpu_custom_call.1} parent=5 // pred_region
      %s156 = ssub.s32 %s8, 1
      %p157 = scmp.lt.s32.totalorder %s18, 1
      %s158 = scalar_select %p157, %s18, 1
      %p159 = scmp.lt.s32.totalorder %s19, 0
      %s160 = scalar_select %p159, %s19, 0
      %s161 = sadd.s32 %s160, %s158
      %s162 = smul.addr %s161, 4
      %s163 = scalar_lea.vmem %s0, %s162
      %p164 = pneg %p55
      %p165 = pneg %p52
      %p166 = scmp.lt.s32.totalorder %s18, 1
      %s167 = scalar_select %p166, %s18, 1
      %p168 = scmp.lt.s32.totalorder %s20, 0
      %s169 = scalar_select %p168, %s20, 0
      %s170 = sadd.s32 %s169, %s167
      %s171 = smul.addr %s170, 4
      %s172 = scalar_lea.vmem %s1, %s171
      %p173 = pneg %p83
      %p174 = pneg %p80
      %p175 = pneg %p111
      %p176 = pneg %p108
      %s177 = smul.u32 2, %s19
      %p178 = scmp.lt.s32.totalorder %s18, 1
      %s179 = scalar_select %p178, %s18, 1
      %p180 = scmp.lt.s32.totalorder %s177, 1
      %s181 = scalar_select %p180, %s177, 1
      %s182 = smul.addr %s179, 2
      %s183 = sadd.s32 %s181, %s182
      %s184 = smul.addr %s183, 8
      %s185 = scalar_lea.vmem %s2, %s184
      %p186 = scmp.lt.s32.totalorder %s18, 1
      %s187 = scalar_select %p186, %s18, 1
      %p188 = scmp.lt.s32.totalorder %s19, 0
      %s189 = scalar_select %p188, %s19, 0
      %s190 = sadd.s32 %s189, %s187
      %s191 = smul.addr %s190, 4
      %s192 = scalar_lea.vmem %s0, %s191
      %p193 = scmp.lt.s32.totalorder %s18, 1
      %s194 = scalar_select %p193, %s18, 1
      %p195 = scmp.lt.s32.totalorder %s20, 0
      %s196 = scalar_select %p195, %s20, 0
      %s197 = sadd.s32 %s196, %s194
      %s198 = smul.addr %s197, 4
      %s199 = scalar_lea.vmem %s1, %s198
      %s200 = smul.u32 2, %s19
      %p201 = scmp.lt.s32.totalorder %s18, 1
      %s202 = scalar_select %p201, %s18, 1
      %p203 = scmp.lt.s32.totalorder %s200, 1
      %s204 = scalar_select %p203, %s200, 1
      %s205 = smul.addr %s202, 2
      %s206 = sadd.s32 %s204, %s205
      %s207 = smul.addr %s206, 8
      %s208 = scalar_lea.vmem %s2, %s207
      %s209 = smul.u32 2, %s19
      %p210 = scmp.eq.s32.totalorder %s20, 0
      // Predicated region
      $region29: #{tpu_custom_call.1} parent=27 // pred_check
        %p211 = pneg %p210
      $region30: #{tpu_custom_call.1} parent=27 // pred_check_branch
        %213 = sbr.rel (%p211) target = $region32
      $region31: #{tpu_custom_call.1} parent=27 // pred_region
        %214 = vst [vmem:[#allocation2] sm:$0xff] inf
        %215 = vst [vmem:[#allocation2 + $0x8] sm:$0xff] inf
        %216 = vst [vmem:[#allocation3] sm:$0xff] 0
        %217 = vst [vmem:[#allocation3 + $0x8] sm:$0xff] 0
      $region32: #{tpu_custom_call.1} parent=27 // pred_fallthru
        _
      %v218 = vld [vmem:[%s192] sm:$0x7]
      %v219 = vld [vmem:[%s199] sm:$0x7]
      %220 = vxpose.xlu0.b32.start [1/16] %v218, 128
      %221 = vxpose.xlu0.b32.cont [2/16] 0.0, 128
      %222 = vxpose.xlu0.b32.cont [3/16] 0.0, 128
      %223 = vxpose.xlu0.b32.cont [4/16] 0.0, 128
      %224 = vxpose.xlu0.b32.cont [5/16] 0.0, 128
      %225 = vxpose.xlu0.b32.cont [6/16] 0.0, 128
      %226 = vxpose.xlu0.b32.cont [7/16] 0.0, 128
      %227 = vxpose.xlu0.b32.cont [8/16] 0.0, 128
      %228 = vxpose.xlu0.b32.cont [9/16] 0.0, 128
      %229 = vxpose.xlu0.b32.cont [10/16] 0.0, 128
      %230 = vxpose.xlu0.b32.cont [11/16] 0.0, 128
      %231 = vxpose.xlu0.b32.cont [12/16] 0.0, 128
      %232 = vxpose.xlu0.b32.cont [13/16] 0.0, 128
      %233 = vxpose.xlu0.b32.cont [14/16] 0.0, 128
      %234 = vxpose.xlu0.b32.cont [15/16] 0.0, 128
      %235 = vxpose.xlu0.b32.end [16/16] 0.0, 128
      %v236 = vpop.trf.xlu0
      %v237 = vpop.trf.xlu0
      %v238 = vpop.trf.xlu0
      %v239 = vpop.trf.xlu0
      %v240 = vpop.trf.xlu0
      %v241 = vpop.trf.xlu0
      %v242 = vpop.trf.xlu0
      %v243 = vpop.trf.xlu0
      %v244 = vpop.trf.xlu0
      %v245 = vpop.trf.xlu0
      %v246 = vpop.trf.xlu0
      %v247 = vpop.trf.xlu0
      %v248 = vpop.trf.xlu0
      %v249 = vpop.trf.xlu0
      %v250 = vpop.trf.xlu0
      %v251 = vpop.trf.xlu0
      %vm252 = vcmask 23552
      %v254 = vsel %vm252, %v236, 0
      %v257 = vsel %vm252, %v237, 0
      %vm259 = vcmask 1042432
      %v261 = vsel %vm259, %v219, 0
      %263 = vmatprep.subr.mxu0 0.0
      %264 = vmatpush1.msra.mxu0 %v261
      %265 = vmatprep.subr.mxu0 0.0
      %266 = vmatpush1.msra.mxu0 0.0
      %267 = vmatprep.subr.mxu0 0.0
      %268 = vmatpush1.msra.mxu0 0.0
      %269 = vmatprep.subr.mxu0 0.0
      %270 = vmatpush1.msra.mxu0 0.0
      %271 = vmatprep.subr.mxu0 0.0
      %272 = vmatpush1.msra.mxu0 0.0
      %273 = vmatprep.subr.mxu0 0.0
      %274 = vmatpush1.msra.mxu0 0.0
      %275 = vmatprep.subr.mxu0 0.0
      %276 = vmatpush1.msra.mxu0 0.0
      %277 = vmatprep.subr.mxu0 0.0
      %278 = vmatpush1.msra.mxu0 0.0
      %279 = vmatprep.subr.mxu0 0.0
      %280 = vmatpush1.msra.mxu0 0.0
      %281 = vmatprep.subr.mxu0 0.0
      %282 = vmatpush1.msra.mxu0 0.0
      %283 = vmatprep.subr.mxu0 0.0
      %284 = vmatpush1.msra.mxu0 0.0
      %285 = vmatprep.subr.mxu0 0.0
      %286 = vmatpush1.msra.mxu0 0.0
      %287 = vmatprep.subr.mxu0 0.0
      %288 = vmatpush1.msra.mxu0 0.0
      %289 = vmatprep.subr.mxu0 0.0
      %290 = vmatpush1.msra.mxu0 0.0
      %291 = vmatprep.subr.mxu0 0.0
      %292 = vmatpush1.msra.mxu0 0.0
      %293 = vmatprep.subr.mxu0 0.0
      %294 = vmatpush1.msra.mxu0 0.0
      %295 = vmatprep.subr.mxu0 0.0
      %296 = vmatpush1.msra.mxu0 0.0
      %297 = vmatprep.subr.mxu0 0.0
      %298 = vmatpush1.msra.mxu0 0.0
      %299 = vmatprep.subr.mxu0 0.0
      %300 = vmatpush1.msra.mxu0 0.0
      %301 = vmatprep.subr.mxu0 0.0
      %302 = vmatpush1.msra.mxu0 0.0
      %303 = vmatprep.subr.mxu0 0.0
      %304 = vmatpush1.msra.mxu0 0.0
      %305 = vmatprep.subr.mxu0 0.0
      %306 = vmatpush1.msra.mxu0 0.0
      %307 = vmatprep.subr.mxu0 0.0
      %308 = vmatpush1.msra.mxu0 0.0
      %309 = vmatprep.subr.mxu0 0.0
      %310 = vmatpush1.msra.mxu0 0.0
      %311 = vmatprep.subr.mxu0 0.0
      %312 = vmatpush1.msra.mxu0 0.0
      %313 = vmatprep.subr.mxu0 0.0
      %314 = vmatpush1.msra.mxu0 0.0
      %315 = vmatprep.subr.mxu0 0.0
      %316 = vmatpush1.msra.mxu0 0.0
      %317 = vmatprep.subr.mxu0 0.0
      %318 = vmatpush1.msra.mxu0 0.0
      %319 = vmatprep.subr.mxu0 0.0
      %320 = vmatpush1.msra.mxu0 0.0
      %321 = vmatprep.subr.mxu0 0.0
      %322 = vmatpush1.msra.mxu0 0.0
      %323 = vmatprep.subr.mxu0 0.0
      %324 = vmatpush1.msra.mxu0 0.0
      %325 = vmatprep.subr.mxu0 0.0
      %326 = vmatpush1.msra.mxu0 0.0
      %327 = vmatprep.mubr.f32.mxu0 0.0
      %328 = vmatmul.mubr.f32.gmra.mrb[0].mxu0 %v254
      %v329 = vpop.f32.mrb[0].mxu0
      %v330 = vadd.f32 0.0, %v329
      %v331 = vpop.f32.mrb[0].mxu0
      %332 = vmatprep.mubr.f32.mxu0 0.0
      %333 = vmatmul.mubr.f32.gmra.mrb[0].mxu0 %v257
      %v334 = vpop.f32.mrb[0].mxu0
      %v335 = vadd.f32 0.0, %v334
      %v336 = vpop.f32.mrb[0].mxu0
      %337 = vdwg.mxu0
      %v338 = vmul.f32 %v218, %v218
      %vm339 = vcmask 124928
      %v340 = vsel %vm339, %v338, 0.0
      %v341 = vrot.slane %v340, 4
      %v342 = vadd.f32 %v340, %v341
      %v343 = vrot.slane %v342, 2
      %v344 = vadd.f32 %v342, %v343
      %v345 = vrot.slane %v344, 1
      %v346 = vadd.f32 %v344, %v345
      %348 = vbcast.lane.b32.xlu0 %v346, 256
      %v349 = vpop.permute.xlu0 %348
      %s351 = sor.u32 256, 8
      %352 = vbcast.lane.b32.xlu0 %v346, %s351
      %v353 = vpop.permute.xlu0 %352
      %v354 = vmul.f32 %v219, %v219
      %v355 = vsel %vm339, %v354, 0.0
      %v356 = vrot.slane %v355, 4
      %v357 = vadd.f32 %v355, %v356
      %v358 = vrot.slane %v357, 2
      %v359 = vadd.f32 %v357, %v358
      %v360 = vrot.slane %v359, 1
      %v361 = vadd.f32 %v359, %v360
      %v362 = vadd.f32 %v349, %v361
      %v363 = vadd.f32 %v353, %v361
      %v364 = vmul.f32 %v330, 2.0
      %v365 = vmul.f32 %v335, 2.0
      %v366 = vsub.f32 %v362, %v364
      %v367 = vsub.f32 %v363, %v365
      %v368 = vmax.f32 %v366, 0.0
      %v369 = vmax.f32 %v367, 0.0
      %s370 = smul.u32 %s20, 16
      %v371 = vlaneseq
      %v372 = vand.u32 %v371, 127
      %v373 = vstv %s370
      %v374 = vadd.s32 %v373, %v372
      %v375 = vld [vmem:[#allocation2] sm:$0xff]
      %v376 = vld [vmem:[#allocation2 + $0x8] sm:$0xff]
      %v377 = vld [vmem:[#allocation3] sm:$0xff]
      %v378 = vld [vmem:[#allocation3 + $0x8] sm:$0xff]
      %v379 = vadd.s32 %v372, 128
      %vm380 = vcmask 130048
      %v381 = vsel %vm380, %v368, inf
      %v382 = vmin.f32 %v375, %v381
      %383 = vmin.xlane.f32.xlu0 %v382
      %v384 = vpop.xlane.xlu0 %383
      %v385 = vsel %vm380, %v369, inf
      %v386 = vmin.f32 %v376, %v385
      %387 = vmin.xlane.f32.xlu0 %v386
      %v388 = vpop.xlane.xlu0 %387
      %vm389 = vcmp.eq.f32.partialorder %v375, %v384
      %vm390 = vcmp.eq.f32.partialorder %v368, %v384
      %vm391 = vcmp.eq.f32.partialorder %v376, %v388
      %vm392 = vcmp.eq.f32.partialorder %v369, %v388
      %v393 = vsel %vm389, %v372, 144
      %v394 = vsel %vm390, %v379, 144
      %v395 = vsel %vm391, %v372, 144
      %v396 = vsel %vm392, %v379, 144
      %v397 = vsel %vm380, %v394, 2147483647
      %vm398 = vcmp.lt.s32.totalorder %v393, %v397
      %v399 = vsel %vm398, %v393, %v397
      %v400 = vand.u32 %v399, 65535
      %v401 = vshra.s32 %v399, 16
      %v402 = vcvt.s32.f32 %v400
      %v403 = vcvt.s32.f32 %v401
      %404 = vmin.xlane.f32.xlu0 %v403
      %v405 = vpop.xlane.xlu0 %404
      %vm406 = vcmp.eq.f32.partialorder %v403, %v405
      %v407 = vsel %vm406, %v402, inf
      %408 = vmin.xlane.f32.xlu0 %v407
      %v409 = vpop.xlane.xlu0 %408
      %v410 = vcvt.f32.s32 %v409
      %v411 = vcvt.f32.s32 %v405
      %v412 = vshll.u32 %v411, 16
      %v413 = vadd.s32 %v412, %v410
      %v414 = vsel %vm380, %v396, 2147483647
      %vm415 = vcmp.lt.s32.totalorder %v395, %v414
      %v416 = vsel %vm415, %v395, %v414
      %v417 = vand.u32 %v416, 65535
      %v418 = vshra.s32 %v416, 16
      %v419 = vcvt.s32.f32 %v417
      %v420 = vcvt.s32.f32 %v418
      %421 = vmin.xlane.f32.xlu0 %v420
      %v422 = vpop.xlane.xlu0 %421
      %vm423 = vcmp.eq.f32.partialorder %v420, %v422
      %v424 = vsel %vm423, %v419, inf
      %425 = vmin.xlane.f32.xlu0 %v424
      %v426 = vpop.xlane.xlu0 %425
      %v427 = vcvt.f32.s32 %v426
      %v428 = vcvt.f32.s32 %v422
      %v429 = vshll.u32 %v428, 16
      %v430 = vadd.s32 %v429, %v427
      %vm431 = vcmp.eq.s32.totalorder %v372, %v413
      %vm432 = vcmp.eq.s32.totalorder %v379, %v413
      %vm433 = vcmp.eq.s32.totalorder %v372, %v430
      %vm434 = vcmp.eq.s32.totalorder %v379, %v430
      %v435 = vsel %vm431, %v377, 2147483647
      %v436 = vsel %vm432, %v374, 2147483647
      %v437 = vsel %vm433, %v378, 2147483647
      %v438 = vsel %vm434, %v374, 2147483647
      %v439 = vsel %vm380, %v436, 2147483647
      %vm440 = vcmp.lt.s32.totalorder %v435, %v439
      %v441 = vsel %vm440, %v435, %v439
      %v442 = vand.u32 %v441, 65535
      %v443 = vshra.s32 %v441, 16
      %v444 = vcvt.s32.f32 %v442
      %v445 = vcvt.s32.f32 %v443
      %446 = vmin.xlane.f32.xlu0 %v445
      %v447 = vpop.xlane.xlu0 %446
      %vm448 = vcmp.eq.f32.partialorder %v445, %v447
      %v449 = vsel %vm448, %v444, inf
      %450 = vmin.xlane.f32.xlu0 %v449
      %v451 = vpop.xlane.xlu0 %450
      %v452 = vcvt.f32.s32 %v451
      %v453 = vcvt.f32.s32 %v447
      %v454 = vshll.u32 %v453, 16
      %v455 = vadd.s32 %v454, %v452
      %v456 = vsel %vm380, %v438, 2147483647
      %vm457 = vcmp.lt.s32.totalorder %v437, %v456
      %v458 = vsel %vm457, %v437, %v456
      %v459 = vand.u32 %v458, 65535
      %v460 = vshra.s32 %v458, 16
      %v461 = vcvt.s32.f32 %v459
      %v462 = vcvt.s32.f32 %v460
      %463 = vmin.xlane.f32.xlu0 %v462
      %v464 = vpop.xlane.xlu0 %463
      %vm465 = vcmp.eq.f32.partialorder %v462, %v464
      %v466 = vsel %vm465, %v461, inf
      %467 = vmin.xlane.f32.xlu0 %v466
      %v468 = vpop.xlane.xlu0 %467
      %v469 = vcvt.f32.s32 %v468
      %v470 = vcvt.f32.s32 %v464
      %v471 = vshll.u32 %v470, 16
      %v472 = vadd.s32 %v471, %v469
      %v473 = vsel %vm431, inf, %v375
      %v474 = vsel %vm432, inf, %v368
      %v475 = vsel %vm433, inf, %v376
      %v476 = vsel %vm434, inf, %v369
      %v477 = vsel %vm380, %v474, inf
      %v478 = vmin.f32 %v473, %v477
      %479 = vmin.xlane.f32.xlu0 %v478
      %v480 = vpop.xlane.xlu0 %479
      %v481 = vsel %vm380, %v476, inf
      %v482 = vmin.f32 %v475, %v481
      %483 = vmin.xlane.f32.xlu0 %v482
      %v484 = vpop.xlane.xlu0 %483
      %vm485 = vcmp.eq.f32.partialorder %v473, %v480
      %vm486 = vcmp.eq.f32.partialorder %v474, %v480
      %vm487 = vcmp.eq.f32.partialorder %v475, %v484
      %vm488 = vcmp.eq.f32.partialorder %v476, %v484
      %v489 = vsel %vm485, %v372, 144
      %v490 = vsel %vm486, %v379, 144
      %v491 = vsel %vm487, %v372, 144
      %v492 = vsel %vm488, %v379, 144
      %v493 = vsel %vm380, %v490, 2147483647
      %vm494 = vcmp.lt.s32.totalorder %v489, %v493
      %v495 = vsel %vm494, %v489, %v493
      %v496 = vand.u32 %v495, 65535
      %v497 = vshra.s32 %v495, 16
      %v498 = vcvt.s32.f32 %v496
      %v499 = vcvt.s32.f32 %v497
      %500 = vmin.xlane.f32.xlu0 %v499
      %v501 = vpop.xlane.xlu0 %500
      %vm502 = vcmp.eq.f32.partialorder %v499, %v501
      %v503 = vsel %vm502, %v498, inf
      %504 = vmin.xlane.f32.xlu0 %v503
      %v505 = vpop.xlane.xlu0 %504
      %v506 = vcvt.f32.s32 %v505
      %v507 = vcvt.f32.s32 %v501
      %v508 = vshll.u32 %v507, 16
      %v509 = vadd.s32 %v508, %v506
      %v510 = vsel %vm380, %v492, 2147483647
      %vm511 = vcmp.lt.s32.totalorder %v491, %v510
      %v512 = vsel %vm511, %v491, %v510
      %v513 = vand.u32 %v512, 65535
      %v514 = vshra.s32 %v512, 16
      %v515 = vcvt.s32.f32 %v513
      %v516 = vcvt.s32.f32 %v514
      %517 = vmin.xlane.f32.xlu0 %v516
      %v518 = vpop.xlane.xlu0 %517
      %vm519 = vcmp.eq.f32.partialorder %v516, %v518
      %v520 = vsel %vm519, %v515, inf
      %521 = vmin.xlane.f32.xlu0 %v520
      %v522 = vpop.xlane.xlu0 %521
      %v523 = vcvt.f32.s32 %v522
      %v524 = vcvt.f32.s32 %v518
      %v525 = vshll.u32 %v524, 16
      %v526 = vadd.s32 %v525, %v523
      %vm527 = vcmp.eq.s32.totalorder %v372, %v509
      %vm528 = vcmp.eq.s32.totalorder %v379, %v509
      %vm529 = vcmp.eq.s32.totalorder %v372, %v526
      %vm530 = vcmp.eq.s32.totalorder %v379, %v526
      %v531 = vsel %vm527, %v377, 2147483647
      %v532 = vsel %vm528, %v374, 2147483647
      %v533 = vsel %vm529, %v378, 2147483647
      %v534 = vsel %vm530, %v374, 2147483647
      %v535 = vsel %vm380, %v532, 2147483647
      %vm536 = vcmp.lt.s32.totalorder %v531, %v535
      %v537 = vsel %vm536, %v531, %v535
      %v538 = vand.u32 %v537, 65535
      %v539 = vshra.s32 %v537, 16
      %v540 = vcvt.s32.f32 %v538
      %v541 = vcvt.s32.f32 %v539
      %542 = vmin.xlane.f32.xlu0 %v541
      %v543 = vpop.xlane.xlu0 %542
      %vm544 = vcmp.eq.f32.partialorder %v541, %v543
      %v545 = vsel %vm544, %v540, inf
      %546 = vmin.xlane.f32.xlu0 %v545
      %v547 = vpop.xlane.xlu0 %546
      %v548 = vcvt.f32.s32 %v547
      %v549 = vcvt.f32.s32 %v543
      %v550 = vshll.u32 %v549, 16
      %v551 = vadd.s32 %v550, %v548
      %v552 = vsel %vm380, %v534, 2147483647
      %vm553 = vcmp.lt.s32.totalorder %v533, %v552
      %v554 = vsel %vm553, %v533, %v552
      %v555 = vand.u32 %v554, 65535
      %v556 = vshra.s32 %v554, 16
      %v557 = vcvt.s32.f32 %v555
      %v558 = vcvt.s32.f32 %v556
      %559 = vmin.xlane.f32.xlu0 %v558
      %v560 = vpop.xlane.xlu0 %559
      %vm561 = vcmp.eq.f32.partialorder %v558, %v560
      %v562 = vsel %vm561, %v557, inf
      %563 = vmin.xlane.f32.xlu0 %v562
      %v564 = vpop.xlane.xlu0 %563
      %v565 = vcvt.f32.s32 %v564
      %v566 = vcvt.f32.s32 %v560
      %v567 = vshll.u32 %v566, 16
      %v568 = vadd.s32 %v567, %v565
      %v569 = vsel %vm527, inf, %v473
      %v570 = vsel %vm528, inf, %v474
      %v571 = vsel %vm529, inf, %v475
      %v572 = vsel %vm530, inf, %v476
      %v573 = vsel %vm380, %v570, inf
      %v574 = vmin.f32 %v569, %v573
      %575 = vmin.xlane.f32.xlu0 %v574
      %v576 = vpop.xlane.xlu0 %575
      %v577 = vsel %vm380, %v572, inf
      %v578 = vmin.f32 %v571, %v577
      %579 = vmin.xlane.f32.xlu0 %v578
      %v580 = vpop.xlane.xlu0 %579
      %vm581 = vcmp.eq.f32.partialorder %v569, %v576
      %vm582 = vcmp.eq.f32.partialorder %v570, %v576
      %vm583 = vcmp.eq.f32.partialorder %v571, %v580
      %vm584 = vcmp.eq.f32.partialorder %v572, %v580
      %v585 = vsel %vm581, %v372, 144
      %v586 = vsel %vm582, %v379, 144
      %v587 = vsel %vm583, %v372, 144
      %v588 = vsel %vm584, %v379, 144
      %v589 = vsel %vm380, %v586, 2147483647
      %vm590 = vcmp.lt.s32.totalorder %v585, %v589
      %v591 = vsel %vm590, %v585, %v589
      %v592 = vand.u32 %v591, 65535
      %v593 = vshra.s32 %v591, 16
      %v594 = vcvt.s32.f32 %v592
      %v595 = vcvt.s32.f32 %v593
      %596 = vmin.xlane.f32.xlu0 %v595
      %v597 = vpop.xlane.xlu0 %596
      %vm598 = vcmp.eq.f32.partialorder %v595, %v597
      %v599 = vsel %vm598, %v594, inf
      %600 = vmin.xlane.f32.xlu0 %v599
      %v601 = vpop.xlane.xlu0 %600
      %v602 = vcvt.f32.s32 %v601
      %v603 = vcvt.f32.s32 %v597
      %v604 = vshll.u32 %v603, 16
      %v605 = vadd.s32 %v604, %v602
      %v606 = vsel %vm380, %v588, 2147483647
      %vm607 = vcmp.lt.s32.totalorder %v587, %v606
      %v608 = vsel %vm607, %v587, %v606
      %v609 = vand.u32 %v608, 65535
      %v610 = vshra.s32 %v608, 16
      %v611 = vcvt.s32.f32 %v609
      %v612 = vcvt.s32.f32 %v610
      %613 = vmin.xlane.f32.xlu0 %v612
      %v614 = vpop.xlane.xlu0 %613
      %vm615 = vcmp.eq.f32.partialorder %v612, %v614
      %v616 = vsel %vm615, %v611, inf
      %617 = vmin.xlane.f32.xlu0 %v616
      %v618 = vpop.xlane.xlu0 %617
      %v619 = vcvt.f32.s32 %v618
      %v620 = vcvt.f32.s32 %v614
      %v621 = vshll.u32 %v620, 16
      %v622 = vadd.s32 %v621, %v619
      %vm623 = vcmp.eq.s32.totalorder %v372, %v605
      %vm624 = vcmp.eq.s32.totalorder %v379, %v605
      %vm625 = vcmp.eq.s32.totalorder %v372, %v622
      %vm626 = vcmp.eq.s32.totalorder %v379, %v622
      %v627 = vsel %vm623, %v377, 2147483647
      %v628 = vsel %vm624, %v374, 2147483647
      %v629 = vsel %vm625, %v378, 2147483647
      %v630 = vsel %vm626, %v374, 2147483647
      %v631 = vsel %vm380, %v628, 2147483647
      %vm632 = vcmp.lt.s32.totalorder %v627, %v631
      %v633 = vsel %vm632, %v627, %v631
      %v634 = vand.u32 %v633, 65535
      %v635 = vshra.s32 %v633, 16
      %v636 = vcvt.s32.f32 %v634
      %v637 = vcvt.s32.f32 %v635
      %638 = vmin.xlane.f32.xlu0 %v637
      %v639 = vpop.xlane.xlu0 %638
      %vm640 = vcmp.eq.f32.partialorder %v637, %v639
      %v641 = vsel %vm640, %v636, inf
      %642 = vmin.xlane.f32.xlu0 %v641
      %v643 = vpop.xlane.xlu0 %642
      %v644 = vcvt.f32.s32 %v643
      %v645 = vcvt.f32.s32 %v639
      %v646 = vshll.u32 %v645, 16
      %v647 = vadd.s32 %v646, %v644
      %v648 = vsel %vm380, %v630, 2147483647
      %vm649 = vcmp.lt.s32.totalorder %v629, %v648
      %v650 = vsel %vm649, %v629, %v648
      %v651 = vand.u32 %v650, 65535
      %v652 = vshra.s32 %v650, 16
      %v653 = vcvt.s32.f32 %v651
      %v654 = vcvt.s32.f32 %v652
      %655 = vmin.xlane.f32.xlu0 %v654
      %v656 = vpop.xlane.xlu0 %655
      %vm657 = vcmp.eq.f32.partialorder %v654, %v656
      %v658 = vsel %vm657, %v653, inf
      %659 = vmin.xlane.f32.xlu0 %v658
      %v660 = vpop.xlane.xlu0 %659
      %v661 = vcvt.f32.s32 %v660
      %v662 = vcvt.f32.s32 %v656
      %v663 = vshll.u32 %v662, 16
      %v664 = vadd.s32 %v663, %v661
      %v665 = vsel %vm623, inf, %v569
      %v666 = vsel %vm624, inf, %v570
      %v667 = vsel %vm625, inf, %v571
      %v668 = vsel %vm626, inf, %v572
      %v669 = vsel %vm380, %v666, inf
      %v670 = vmin.f32 %v665, %v669
      %671 = vmin.xlane.f32.xlu0 %v670
      %v672 = vpop.xlane.xlu0 %671
      %v673 = vsel %vm380, %v668, inf
      %v674 = vmin.f32 %v667, %v673
      %675 = vmin.xlane.f32.xlu0 %v674
      %v676 = vpop.xlane.xlu0 %675
      %vm677 = vcmp.eq.f32.partialorder %v665, %v672
      %vm678 = vcmp.eq.f32.partialorder %v666, %v672
      %vm679 = vcmp.eq.f32.partialorder %v667, %v676
      %vm680 = vcmp.eq.f32.partialorder %v668, %v676
      %v681 = vsel %vm677, %v372, 144
      %v682 = vsel %vm678, %v379, 144
      %v683 = vsel %vm679, %v372, 144
      %v684 = vsel %vm680, %v379, 144
      %v685 = vsel %vm380, %v682, 2147483647
      %vm686 = vcmp.lt.s32.totalorder %v681, %v685
      %v687 = vsel %vm686, %v681, %v685
      %v688 = vand.u32 %v687, 65535
      %v689 = vshra.s32 %v687, 16
      %v690 = vcvt.s32.f32 %v688
      %v691 = vcvt.s32.f32 %v689
      %692 = vmin.xlane.f32.xlu0 %v691
      %v693 = vpop.xlane.xlu0 %692
      %vm694 = vcmp.eq.f32.partialorder %v691, %v693
      %v695 = vsel %vm694, %v690, inf
      %696 = vmin.xlane.f32.xlu0 %v695
      %v697 = vpop.xlane.xlu0 %696
      %v698 = vcvt.f32.s32 %v697
      %v699 = vcvt.f32.s32 %v693
      %v700 = vshll.u32 %v699, 16
      %v701 = vadd.s32 %v700, %v698
      %v702 = vsel %vm380, %v684, 2147483647
      %vm703 = vcmp.lt.s32.totalorder %v683, %v702
      %v704 = vsel %vm703, %v683, %v702
      %v705 = vand.u32 %v704, 65535
      %v706 = vshra.s32 %v704, 16
      %v707 = vcvt.s32.f32 %v705
      %v708 = vcvt.s32.f32 %v706
      %709 = vmin.xlane.f32.xlu0 %v708
      %v710 = vpop.xlane.xlu0 %709
      %vm711 = vcmp.eq.f32.partialorder %v708, %v710
      %v712 = vsel %vm711, %v707, inf
      %713 = vmin.xlane.f32.xlu0 %v712
      %v714 = vpop.xlane.xlu0 %713
      %v715 = vcvt.f32.s32 %v714
      %v716 = vcvt.f32.s32 %v710
      %v717 = vshll.u32 %v716, 16
      %v718 = vadd.s32 %v717, %v715
      %vm719 = vcmp.eq.s32.totalorder %v372, %v701
      %vm720 = vcmp.eq.s32.totalorder %v379, %v701
      %vm721 = vcmp.eq.s32.totalorder %v372, %v718
      %vm722 = vcmp.eq.s32.totalorder %v379, %v718
      %v723 = vsel %vm719, %v377, 2147483647
      %v724 = vsel %vm720, %v374, 2147483647
      %v725 = vsel %vm721, %v378, 2147483647
      %v726 = vsel %vm722, %v374, 2147483647
      %v727 = vsel %vm380, %v724, 2147483647
      %vm728 = vcmp.lt.s32.totalorder %v723, %v727
      %v729 = vsel %vm728, %v723, %v727
      %v730 = vand.u32 %v729, 65535
      %v731 = vshra.s32 %v729, 16
      %v732 = vcvt.s32.f32 %v730
      %v733 = vcvt.s32.f32 %v731
      %734 = vmin.xlane.f32.xlu0 %v733
      %v735 = vpop.xlane.xlu0 %734
      %vm736 = vcmp.eq.f32.partialorder %v733, %v735
      %v737 = vsel %vm736, %v732, inf
      %738 = vmin.xlane.f32.xlu0 %v737
      %v739 = vpop.xlane.xlu0 %738
      %v740 = vcvt.f32.s32 %v739
      %v741 = vcvt.f32.s32 %v735
      %v742 = vshll.u32 %v741, 16
      %v743 = vadd.s32 %v742, %v740
      %v744 = vsel %vm380, %v726, 2147483647
      %vm745 = vcmp.lt.s32.totalorder %v725, %v744
      %v746 = vsel %vm745, %v725, %v744
      %v747 = vand.u32 %v746, 65535
      %v748 = vshra.s32 %v746, 16
      %v749 = vcvt.s32.f32 %v747
      %v750 = vcvt.s32.f32 %v748
      %751 = vmin.xlane.f32.xlu0 %v750
      %v752 = vpop.xlane.xlu0 %751
      %vm753 = vcmp.eq.f32.partialorder %v750, %v752
      %v754 = vsel %vm753, %v749, inf
      %755 = vmin.xlane.f32.xlu0 %v754
      %v756 = vpop.xlane.xlu0 %755
      %v757 = vcvt.f32.s32 %v756
      %v758 = vcvt.f32.s32 %v752
      %v759 = vshll.u32 %v758, 16
      %v760 = vadd.s32 %v759, %v757
      %v761 = vsel %vm719, inf, %v665
      %v762 = vsel %vm720, inf, %v666
      %v763 = vsel %vm721, inf, %v667
      %v764 = vsel %vm722, inf, %v668
      %v765 = vsel %vm380, %v762, inf
      %v766 = vmin.f32 %v761, %v765
      %767 = vmin.xlane.f32.xlu0 %v766
      %v768 = vpop.xlane.xlu0 %767
      %v769 = vsel %vm380, %v764, inf
      %v770 = vmin.f32 %v763, %v769
      %771 = vmin.xlane.f32.xlu0 %v770
      %v772 = vpop.xlane.xlu0 %771
      %vm773 = vcmp.eq.f32.partialorder %v761, %v768
      %vm774 = vcmp.eq.f32.partialorder %v762, %v768
      %vm775 = vcmp.eq.f32.partialorder %v763, %v772
      %vm776 = vcmp.eq.f32.partialorder %v764, %v772
      %v777 = vsel %vm773, %v372, 144
      %v778 = vsel %vm774, %v379, 144
      %v779 = vsel %vm775, %v372, 144
      %v780 = vsel %vm776, %v379, 144
      %v781 = vsel %vm380, %v778, 2147483647
      %vm782 = vcmp.lt.s32.totalorder %v777, %v781
      %v783 = vsel %vm782, %v777, %v781
      %v784 = vand.u32 %v783, 65535
      %v785 = vshra.s32 %v783, 16
      %v786 = vcvt.s32.f32 %v784
      %v787 = vcvt.s32.f32 %v785
      %788 = vmin.xlane.f32.xlu0 %v787
      %v789 = vpop.xlane.xlu0 %788
      %vm790 = vcmp.eq.f32.partialorder %v787, %v789
      %v791 = vsel %vm790, %v786, inf
      %792 = vmin.xlane.f32.xlu0 %v791
      %v793 = vpop.xlane.xlu0 %792
      %v794 = vcvt.f32.s32 %v793
      %v795 = vcvt.f32.s32 %v789
      %v796 = vshll.u32 %v795, 16
      %v797 = vadd.s32 %v796, %v794
      %v798 = vsel %vm380, %v780, 2147483647
      %vm799 = vcmp.lt.s32.totalorder %v779, %v798
      %v800 = vsel %vm799, %v779, %v798
      %v801 = vand.u32 %v800, 65535
      %v802 = vshra.s32 %v800, 16
      %v803 = vcvt.s32.f32 %v801
      %v804 = vcvt.s32.f32 %v802
      %805 = vmin.xlane.f32.xlu0 %v804
      %v806 = vpop.xlane.xlu0 %805
      %vm807 = vcmp.eq.f32.partialorder %v804, %v806
      %v808 = vsel %vm807, %v803, inf
      %809 = vmin.xlane.f32.xlu0 %v808
      %v810 = vpop.xlane.xlu0 %809
      %v811 = vcvt.f32.s32 %v810
      %v812 = vcvt.f32.s32 %v806
      %v813 = vshll.u32 %v812, 16
      %v814 = vadd.s32 %v813, %v811
      %vm815 = vcmp.eq.s32.totalorder %v372, %v797
      %vm816 = vcmp.eq.s32.totalorder %v379, %v797
      %vm817 = vcmp.eq.s32.totalorder %v372, %v814
      %vm818 = vcmp.eq.s32.totalorder %v379, %v814
      %v819 = vsel %vm815, %v377, 2147483647
      %v820 = vsel %vm816, %v374, 2147483647
      %v821 = vsel %vm817, %v378, 2147483647
      %v822 = vsel %vm818, %v374, 2147483647
      %v823 = vsel %vm380, %v820, 2147483647
      %vm824 = vcmp.lt.s32.totalorder %v819, %v823
      %v825 = vsel %vm824, %v819, %v823
      %v826 = vand.u32 %v825, 65535
      %v827 = vshra.s32 %v825, 16
      %v828 = vcvt.s32.f32 %v826
      %v829 = vcvt.s32.f32 %v827
      %830 = vmin.xlane.f32.xlu0 %v829
      %v831 = vpop.xlane.xlu0 %830
      %vm832 = vcmp.eq.f32.partialorder %v829, %v831
      %v833 = vsel %vm832, %v828, inf
      %834 = vmin.xlane.f32.xlu0 %v833
      %v835 = vpop.xlane.xlu0 %834
      %v836 = vcvt.f32.s32 %v835
      %v837 = vcvt.f32.s32 %v831
      %v838 = vshll.u32 %v837, 16
      %v839 = vadd.s32 %v838, %v836
      %v840 = vsel %vm380, %v822, 2147483647
      %vm841 = vcmp.lt.s32.totalorder %v821, %v840
      %v842 = vsel %vm841, %v821, %v840
      %v843 = vand.u32 %v842, 65535
      %v844 = vshra.s32 %v842, 16
      %v845 = vcvt.s32.f32 %v843
      %v846 = vcvt.s32.f32 %v844
      %847 = vmin.xlane.f32.xlu0 %v846
      %v848 = vpop.xlane.xlu0 %847
      %vm849 = vcmp.eq.f32.partialorder %v846, %v848
      %v850 = vsel %vm849, %v845, inf
      %851 = vmin.xlane.f32.xlu0 %v850
      %v852 = vpop.xlane.xlu0 %851
      %v853 = vcvt.f32.s32 %v852
      %v854 = vcvt.f32.s32 %v848
      %v855 = vshll.u32 %v854, 16
      %v856 = vadd.s32 %v855, %v853
      %v857 = vsel %vm815, inf, %v761
      %v858 = vsel %vm816, inf, %v762
      %v859 = vsel %vm817, inf, %v763
      %v860 = vsel %vm818, inf, %v764
      %v861 = vsel %vm380, %v858, inf
      %v862 = vmin.f32 %v857, %v861
      %863 = vmin.xlane.f32.xlu0 %v862
      %v864 = vpop.xlane.xlu0 %863
      %v865 = vsel %vm380, %v860, inf
      %v866 = vmin.f32 %v859, %v865
      %867 = vmin.xlane.f32.xlu0 %v866
      %v868 = vpop.xlane.xlu0 %867
      %vm869 = vcmp.eq.f32.partialorder %v857, %v864
      %vm870 = vcmp.eq.f32.partialorder %v858, %v864
      %vm871 = vcmp.eq.f32.partialorder %v859, %v868
      %vm872 = vcmp.eq.f32.partialorder %v860, %v868
      %v873 = vsel %vm869, %v372, 144
      %v874 = vsel %vm870, %v379, 144
      %v875 = vsel %vm871, %v372, 144
      %v876 = vsel %vm872, %v379, 144
      %v877 = vsel %vm380, %v874, 2147483647
      %vm878 = vcmp.lt.s32.totalorder %v873, %v877
      %v879 = vsel %vm878, %v873, %v877
      %v880 = vand.u32 %v879, 65535
      %v881 = vshra.s32 %v879, 16
      %v882 = vcvt.s32.f32 %v880
      %v883 = vcvt.s32.f32 %v881
      %884 = vmin.xlane.f32.xlu0 %v883
      %v885 = vpop.xlane.xlu0 %884
      %vm886 = vcmp.eq.f32.partialorder %v883, %v885
      %v887 = vsel %vm886, %v882, inf
      %888 = vmin.xlane.f32.xlu0 %v887
      %v889 = vpop.xlane.xlu0 %888
      %v890 = vcvt.f32.s32 %v889
      %v891 = vcvt.f32.s32 %v885
      %v892 = vshll.u32 %v891, 16
      %v893 = vadd.s32 %v892, %v890
      %v894 = vsel %vm380, %v876, 2147483647
      %vm895 = vcmp.lt.s32.totalorder %v875, %v894
      %v896 = vsel %vm895, %v875, %v894
      %v897 = vand.u32 %v896, 65535
      %v898 = vshra.s32 %v896, 16
      %v899 = vcvt.s32.f32 %v897
      %v900 = vcvt.s32.f32 %v898
      %901 = vmin.xlane.f32.xlu0 %v900
      %v902 = vpop.xlane.xlu0 %901
      %vm903 = vcmp.eq.f32.partialorder %v900, %v902
      %v904 = vsel %vm903, %v899, inf
      %905 = vmin.xlane.f32.xlu0 %v904
      %v906 = vpop.xlane.xlu0 %905
      %v907 = vcvt.f32.s32 %v906
      %v908 = vcvt.f32.s32 %v902
      %v909 = vshll.u32 %v908, 16
      %v910 = vadd.s32 %v909, %v907
      %vm911 = vcmp.eq.s32.totalorder %v372, %v893
      %vm912 = vcmp.eq.s32.totalorder %v379, %v893
      %vm913 = vcmp.eq.s32.totalorder %v372, %v910
      %vm914 = vcmp.eq.s32.totalorder %v379, %v910
      %v915 = vsel %vm911, %v377, 2147483647
      %v916 = vsel %vm912, %v374, 2147483647
      %v917 = vsel %vm913, %v378, 2147483647
      %v918 = vsel %vm914, %v374, 2147483647
      %v919 = vsel %vm380, %v916, 2147483647
      %vm920 = vcmp.lt.s32.totalorder %v915, %v919
      %v921 = vsel %vm920, %v915, %v919
      %v922 = vand.u32 %v921, 65535
      %v923 = vshra.s32 %v921, 16
      %v924 = vcvt.s32.f32 %v922
      %v925 = vcvt.s32.f32 %v923
      %926 = vmin.xlane.f32.xlu0 %v925
      %v927 = vpop.xlane.xlu0 %926
      %vm928 = vcmp.eq.f32.partialorder %v925, %v927
      %v929 = vsel %vm928, %v924, inf
      %930 = vmin.xlane.f32.xlu0 %v929
      %v931 = vpop.xlane.xlu0 %930
      %v932 = vcvt.f32.s32 %v931
      %v933 = vcvt.f32.s32 %v927
      %v934 = vshll.u32 %v933, 16
      %v935 = vadd.s32 %v934, %v932
      %v936 = vsel %vm380, %v918, 2147483647
      %vm937 = vcmp.lt.s32.totalorder %v917, %v936
      %v938 = vsel %vm937, %v917, %v936
      %v939 = vand.u32 %v938, 65535
      %v940 = vshra.s32 %v938, 16
      %v941 = vcvt.s32.f32 %v939
      %v942 = vcvt.s32.f32 %v940
      %943 = vmin.xlane.f32.xlu0 %v942
      %v944 = vpop.xlane.xlu0 %943
      %vm945 = vcmp.eq.f32.partialorder %v942, %v944
      %v946 = vsel %vm945, %v941, inf
      %947 = vmin.xlane.f32.xlu0 %v946
      %v948 = vpop.xlane.xlu0 %947
      %v949 = vcvt.f32.s32 %v948
      %v950 = vcvt.f32.s32 %v944
      %v951 = vshll.u32 %v950, 16
      %v952 = vadd.s32 %v951, %v949
      %v953 = vsel %vm911, inf, %v857
      %v954 = vsel %vm912, inf, %v858
      %v955 = vsel %vm913, inf, %v859
      %v956 = vsel %vm914, inf, %v860
      %v957 = vsel %vm380, %v954, inf
      %v958 = vmin.f32 %v953, %v957
      %959 = vmin.xlane.f32.xlu0 %v958
      %v960 = vpop.xlane.xlu0 %959
      %v961 = vsel %vm380, %v956, inf
      %v962 = vmin.f32 %v955, %v961
      %963 = vmin.xlane.f32.xlu0 %v962
      %v964 = vpop.xlane.xlu0 %963
      %vm965 = vcmp.eq.f32.partialorder %v953, %v960
      %vm966 = vcmp.eq.f32.partialorder %v954, %v960
      %vm967 = vcmp.eq.f32.partialorder %v955, %v964
      %vm968 = vcmp.eq.f32.partialorder %v956, %v964
      %v969 = vsel %vm965, %v372, 144
      %v970 = vsel %vm966, %v379, 144
      %v971 = vsel %vm967, %v372, 144
      %v972 = vsel %vm968, %v379, 144
      %v973 = vsel %vm380, %v970, 2147483647
      %vm974 = vcmp.lt.s32.totalorder %v969, %v973
      %v975 = vsel %vm974, %v969, %v973
      %v976 = vand.u32 %v975, 65535
      %v977 = vshra.s32 %v975, 16
      %v978 = vcvt.s32.f32 %v976
      %v979 = vcvt.s32.f32 %v977
      %980 = vmin.xlane.f32.xlu0 %v979
      %v981 = vpop.xlane.xlu0 %980
      %vm982 = vcmp.eq.f32.partialorder %v979, %v981
      %v983 = vsel %vm982, %v978, inf
      %984 = vmin.xlane.f32.xlu0 %v983
      %v985 = vpop.xlane.xlu0 %984
      %v986 = vcvt.f32.s32 %v985
      %v987 = vcvt.f32.s32 %v981
      %v988 = vshll.u32 %v987, 16
      %v989 = vadd.s32 %v988, %v986
      %v990 = vsel %vm380, %v972, 2147483647
      %vm991 = vcmp.lt.s32.totalorder %v971, %v990
      %v992 = vsel %vm991, %v971, %v990
      %v993 = vand.u32 %v992, 65535
      %v994 = vshra.s32 %v992, 16
      %v995 = vcvt.s32.f32 %v993
      %v996 = vcvt.s32.f32 %v994
      %997 = vmin.xlane.f32.xlu0 %v996
      %v998 = vpop.xlane.xlu0 %997
      %vm999 = vcmp.eq.f32.partialorder %v996, %v998
      %v1000 = vsel %vm999, %v995, inf
      %1001 = vmin.xlane.f32.xlu0 %v1000
      %v1002 = vpop.xlane.xlu0 %1001
      %v1003 = vcvt.f32.s32 %v1002
      %v1004 = vcvt.f32.s32 %v998
      %v1005 = vshll.u32 %v1004, 16
      %v1006 = vadd.s32 %v1005, %v1003
      %vm1007 = vcmp.eq.s32.totalorder %v372, %v989
      %vm1008 = vcmp.eq.s32.totalorder %v379, %v989
      %vm1009 = vcmp.eq.s32.totalorder %v372, %v1006
      %vm1010 = vcmp.eq.s32.totalorder %v379, %v1006
      %v1011 = vsel %vm1007, %v377, 2147483647
      %v1012 = vsel %vm1008, %v374, 2147483647
      %v1013 = vsel %vm1009, %v378, 2147483647
      %v1014 = vsel %vm1010, %v374, 2147483647
      %v1015 = vsel %vm380, %v1012, 2147483647
      %vm1016 = vcmp.lt.s32.totalorder %v1011, %v1015
      %v1017 = vsel %vm1016, %v1011, %v1015
      %v1018 = vand.u32 %v1017, 65535
      %v1019 = vshra.s32 %v1017, 16
      %v1020 = vcvt.s32.f32 %v1018
      %v1021 = vcvt.s32.f32 %v1019
      %1022 = vmin.xlane.f32.xlu0 %v1021
      %v1023 = vpop.xlane.xlu0 %1022
      %vm1024 = vcmp.eq.f32.partialorder %v1021, %v1023
      %v1025 = vsel %vm1024, %v1020, inf
      %1026 = vmin.xlane.f32.xlu0 %v1025
      %v1027 = vpop.xlane.xlu0 %1026
      %v1028 = vcvt.f32.s32 %v1027
      %v1029 = vcvt.f32.s32 %v1023
      %v1030 = vshll.u32 %v1029, 16
      %v1031 = vadd.s32 %v1030, %v1028
      %v1032 = vsel %vm380, %v1014, 2147483647
      %vm1033 = vcmp.lt.s32.totalorder %v1013, %v1032
      %v1034 = vsel %vm1033, %v1013, %v1032
      %v1035 = vand.u32 %v1034, 65535
      %v1036 = vshra.s32 %v1034, 16
      %v1037 = vcvt.s32.f32 %v1035
      %v1038 = vcvt.s32.f32 %v1036
      %1039 = vmin.xlane.f32.xlu0 %v1038
      %v1040 = vpop.xlane.xlu0 %1039
      %vm1041 = vcmp.eq.f32.partialorder %v1038, %v1040
      %v1042 = vsel %vm1041, %v1037, inf
      %1043 = vmin.xlane.f32.xlu0 %v1042
      %v1044 = vpop.xlane.xlu0 %1043
      %v1045 = vcvt.f32.s32 %v1044
      %v1046 = vcvt.f32.s32 %v1040
      %v1047 = vshll.u32 %v1046, 16
      %v1048 = vadd.s32 %v1047, %v1045
      %v1049 = vsel %vm1007, inf, %v953
      %v1050 = vsel %vm1008, inf, %v954
      %v1051 = vsel %vm1009, inf, %v955
      %v1052 = vsel %vm1010, inf, %v956
      %v1053 = vsel %vm380, %v1050, inf
      %v1054 = vmin.f32 %v1049, %v1053
      %1055 = vmin.xlane.f32.xlu0 %v1054
      %v1056 = vpop.xlane.xlu0 %1055
      %v1057 = vsel %vm380, %v1052, inf
      %v1058 = vmin.f32 %v1051, %v1057
      %1059 = vmin.xlane.f32.xlu0 %v1058
      %v1060 = vpop.xlane.xlu0 %1059
      %vm1061 = vcmp.eq.f32.partialorder %v1049, %v1056
      %vm1062 = vcmp.eq.f32.partialorder %v1050, %v1056
      %vm1063 = vcmp.eq.f32.partialorder %v1051, %v1060
      %vm1064 = vcmp.eq.f32.partialorder %v1052, %v1060
      %v1065 = vsel %vm1061, %v372, 144
      %v1066 = vsel %vm1062, %v379, 144
      %v1067 = vsel %vm1063, %v372, 144
      %v1068 = vsel %vm1064, %v379, 144
      %v1069 = vsel %vm380, %v1066, 2147483647
      %vm1070 = vcmp.lt.s32.totalorder %v1065, %v1069
      %v1071 = vsel %vm1070, %v1065, %v1069
      %v1072 = vand.u32 %v1071, 65535
      %v1073 = vshra.s32 %v1071, 16
      %v1074 = vcvt.s32.f32 %v1072
      %v1075 = vcvt.s32.f32 %v1073
      %1076 = vmin.xlane.f32.xlu0 %v1075
      %v1077 = vpop.xlane.xlu0 %1076
      %vm1078 = vcmp.eq.f32.partialorder %v1075, %v1077
      %v1079 = vsel %vm1078, %v1074, inf
      %1080 = vmin.xlane.f32.xlu0 %v1079
      %v1081 = vpop.xlane.xlu0 %1080
      %v1082 = vcvt.f32.s32 %v1081
      %v1083 = vcvt.f32.s32 %v1077
      %v1084 = vshll.u32 %v1083, 16
      %v1085 = vadd.s32 %v1084, %v1082
      %v1086 = vsel %vm380, %v1068, 2147483647
      %vm1087 = vcmp.lt.s32.totalorder %v1067, %v1086
      %v1088 = vsel %vm1087, %v1067, %v1086
      %v1089 = vand.u32 %v1088, 65535
      %v1090 = vshra.s32 %v1088, 16
      %v1091 = vcvt.s32.f32 %v1089
      %v1092 = vcvt.s32.f32 %v1090
      %1093 = vmin.xlane.f32.xlu0 %v1092
      %v1094 = vpop.xlane.xlu0 %1093
      %vm1095 = vcmp.eq.f32.partialorder %v1092, %v1094
      %v1096 = vsel %vm1095, %v1091, inf
      %1097 = vmin.xlane.f32.xlu0 %v1096
      %v1098 = vpop.xlane.xlu0 %1097
      %v1099 = vcvt.f32.s32 %v1098
      %v1100 = vcvt.f32.s32 %v1094
      %v1101 = vshll.u32 %v1100, 16
      %v1102 = vadd.s32 %v1101, %v1099
      %vm1103 = vcmp.eq.s32.totalorder %v372, %v1085
      %vm1104 = vcmp.eq.s32.totalorder %v379, %v1085
      %vm1105 = vcmp.eq.s32.totalorder %v372, %v1102
      %vm1106 = vcmp.eq.s32.totalorder %v379, %v1102
      %v1107 = vsel %vm1103, %v377, 2147483647
      %v1108 = vsel %vm1104, %v374, 2147483647
      %v1109 = vsel %vm1105, %v378, 2147483647
      %v1110 = vsel %vm1106, %v374, 2147483647
      %v1111 = vsel %vm380, %v1108, 2147483647
      %vm1112 = vcmp.lt.s32.totalorder %v1107, %v1111
      %v1113 = vsel %vm1112, %v1107, %v1111
      %v1114 = vand.u32 %v1113, 65535
      %v1115 = vshra.s32 %v1113, 16
      %v1116 = vcvt.s32.f32 %v1114
      %v1117 = vcvt.s32.f32 %v1115
      %1118 = vmin.xlane.f32.xlu0 %v1117
      %v1119 = vpop.xlane.xlu0 %1118
      %vm1120 = vcmp.eq.f32.partialorder %v1117, %v1119
      %v1121 = vsel %vm1120, %v1116, inf
      %1122 = vmin.xlane.f32.xlu0 %v1121
      %v1123 = vpop.xlane.xlu0 %1122
      %v1124 = vcvt.f32.s32 %v1123
      %v1125 = vcvt.f32.s32 %v1119
      %v1126 = vshll.u32 %v1125, 16
      %v1127 = vadd.s32 %v1126, %v1124
      %v1128 = vsel %vm380, %v1110, 2147483647
      %vm1129 = vcmp.lt.s32.totalorder %v1109, %v1128
      %v1130 = vsel %vm1129, %v1109, %v1128
      %v1131 = vand.u32 %v1130, 65535
      %v1132 = vshra.s32 %v1130, 16
      %v1133 = vcvt.s32.f32 %v1131
      %v1134 = vcvt.s32.f32 %v1132
      %1135 = vmin.xlane.f32.xlu0 %v1134
      %v1136 = vpop.xlane.xlu0 %1135
      %vm1137 = vcmp.eq.f32.partialorder %v1134, %v1136
      %v1138 = vsel %vm1137, %v1133, inf
      %1139 = vmin.xlane.f32.xlu0 %v1138
      %v1140 = vpop.xlane.xlu0 %1139
      %v1141 = vcvt.f32.s32 %v1140
      %v1142 = vcvt.f32.s32 %v1136
      %v1143 = vshll.u32 %v1142, 16
      %v1144 = vadd.s32 %v1143, %v1141
      %vm1145 = vcmask 7168
      %v1146 = vsel %vm1145, %v384, %v480
      %v1147 = vsel %vm1145, %v388, %v484
      %vm1148 = vcmask 15360
      %v1149 = vsel %vm1148, %v1146, %v576
      %v1150 = vsel %vm1148, %v1147, %v580
      %v1151 = vsel %vm252, %v1149, %v672
      %v1152 = vsel %vm252, %v1150, %v676
      %vm1153 = vcmask 31744
      %v1154 = vsel %vm1153, %v1151, %v768
      %v1155 = vsel %vm1153, %v1152, %v772
      %vm1156 = vcmask 39936
      %v1157 = vsel %vm1156, %v1154, %v864
      %v1158 = vsel %vm1156, %v1155, %v868
      %vm1159 = vcmask 48128
      %v1160 = vsel %vm1159, %v1157, %v960
      %v1161 = vsel %vm1159, %v1158, %v964
      %vm1162 = vcmask 56320
      %v1163 = vsel %vm1162, %v1160, %v1056
      %v1164 = vsel %vm1162, %v1161, %v1060
      %v1165 = vsel %vm1145, %v455, %v551
      %v1166 = vsel %vm1145, %v472, %v568
      %v1167 = vsel %vm1148, %v1165, %v647
      %v1168 = vsel %vm1148, %v1166, %v664
      %v1169 = vsel %vm252, %v1167, %v743
      %v1170 = vsel %vm252, %v1168, %v760
      %v1171 = vsel %vm1153, %v1169, %v839
      %v1172 = vsel %vm1153, %v1170, %v856
      %v1173 = vsel %vm1156, %v1171, %v935
      %v1174 = vsel %vm1156, %v1172, %v952
      %v1175 = vsel %vm1159, %v1173, %v1031
      %v1176 = vsel %vm1159, %v1174, %v1048
      %v1177 = vsel %vm1162, %v1175, %v1127
      %v1178 = vsel %vm1162, %v1176, %v1144
      %vm1179 = vcmask 64512
      %1180 = vst.msk [vmem:[#allocation2] sm:$0xff] %vm1179, %v1163
      %1181 = vst.msk [vmem:[#allocation2 + $0x8] sm:$0xff] %vm1179, %v1164
      %1182 = vst.msk [vmem:[#allocation3] sm:$0xff] %vm1179, %v1177
      %1183 = vst.msk [vmem:[#allocation3 + $0x8] sm:$0xff] %vm1179, %v1178
      // Predicated region
      $region33: #{tpu_custom_call.1} parent=27 // pred_check
        %p1184 = pneg %p210
      $region34: #{tpu_custom_call.1} parent=27 // pred_check_branch
        %1186 = sbr.rel (%p1184) target = $region36
      $region35: #{tpu_custom_call.1} parent=27 // pred_region
        %1187 = vst.msk [vmem:[%s208] sm:$0xff] %vm1179, %v1177
        %1188 = vst.msk [vmem:[%s208 + $0x8] sm:$0xff] %vm1179, %v1178
      $region36: #{tpu_custom_call.1} parent=27 // pred_fallthru
        _
      %s1189 = smul.u32 2, %s19
      %p1190 = scmp.lt.s32.totalorder %s18, 1
      %s1191 = scalar_select %p1190, %s18, 1
      %p1192 = scmp.lt.s32.totalorder %s1189, 1
      %s1193 = scalar_select %p1192, %s1189, 1
      %s1194 = smul.addr %s1191, 2
      %s1195 = sadd.s32 %s1193, %s1194
      %s1196 = smul.addr %s1195, 8
      %s1197 = scalar_lea.vmem %s2, %s1196
      // Predicated region
      $region37: #{tpu_custom_call.1} parent=27 // pred_check
        %p1198 = pneg %p108
      $region38: #{tpu_custom_call.1} parent=27 // pred_check_branch
        %1200 = sbr.rel (%p1198) target = $region40
      $region39: #{tpu_custom_call.1} parent=27 // pred_region
        %s1201 = smul.u32 2, %s19
      $region40: #{tpu_custom_call.1} parent=27 // pred_fallthru
        _
    $region28: #{tpu_custom_call.1} parent=5 // pred_fallthru
      _
    %p1202 = scmp.le.s32.totalorder 2, %s8
    // Predicated region
    $region41: #{tpu_custom_call.1} parent=5 // pred_check
      %p1203 = pneg %p1202
    $region42: #{tpu_custom_call.1} parent=5 // pred_check_branch
      %1205 = sbr.rel (%p1203) target = $region44
    $region43: #{tpu_custom_call.1} parent=5 // pred_region
      %s1206 = ssub.s32 %s8, 2
      // Predicated region
      $region45: #{tpu_custom_call.1} parent=43 // pred_check
        %p1207 = pneg %p114
      $region46: #{tpu_custom_call.1} parent=43 // pred_check_branch
        %1209 = sbr.rel (%p1207) target = $region48
      $region47: #{tpu_custom_call.1} parent=43 // pred_region
        %s1210 = smul.u32 2, %s22
        %p1211 = scmp.lt.s32.totalorder %s21, 1
        %s1212 = scalar_select %p1211, %s21, 1
        %p1213 = scmp.lt.s32.totalorder %s1210, 1
        %s1214 = scalar_select %p1213, %s1210, 1
        %s1215 = smul.addr %s1212, 2
        %s1216 = sadd.s32 %s1214, %s1215
        %s1217 = smul.addr %s1216, 8
        %s1218 = scalar_lea.vmem %s2, %s1217
      $region48: #{tpu_custom_call.1} parent=43 // pred_fallthru
        _
    $region44: #{tpu_custom_call.1} parent=5 // pred_fallthru
      _
  $region6: #{tpu_custom_call.1} parent=0 // loop_footer
    %s12 = sadd.s32 1, %s8
  $region7: #{tpu_custom_call.1} parent=0 // loop_footer_branch
    %7 = sbr.rel target = $region3
  $region8: #{tpu_custom_call.1} parent=0 // loop_exit
    _

</llo_original>
